<compile_context>
chip_gen: v6e
topology: v6e:2x2x1
jax: 0.10.0
libtpu: 0.0.40
codegen_flags: <defaults>
</compile_context>

<pallas_src>
import functools

import jax
import jax.numpy as jnp
from jax import lax
from jax.experimental import pallas as pl
from jax.experimental.pallas import tpu as pltpu


def _fusion_kernel(pk_ref, x_ref, y_ref, o_ref, xpad_ref, *, C, H, W, Cout):
    # pk_ref  : (C2+C+Cout, K) fp32 packed parameter table in SMEM
    #             rows [0, C2)       : 9 scale-folded depthwise taps | col 9  = BN1 shift
    #             rows [C2, C2+C)    : scale-folded conv1_1 row      | col C2 = BN1_1 shift
    #             rows [C2+C, +Cout) : final conv row                | col C  = final bias
    # x_ref   : (1, C, H, W) NCHW block of x
    # y_ref   : (1, C, H, W) NCHW block of y
    # o_ref   : (1, Cout, H, W) NCHW output block (wrapper applies the final permute)
    # xpad_ref: (H+2, W+2) fp32 VMEM scratch reused per channel (fused pad buffer)
    C2 = 2 * C
    f32 = jnp.float32

    # Zero the pad scratch once per grid step; the interior is fully
    # overwritten for every channel, so the 1-pixel zero border persists.
    xpad_ref[...] = jnp.zeros_like(xpad_ref)

    # ---- depthwise 3x3 "same" conv (BN1 scale pre-folded into the taps)
    #      + BN1 shift + ReLU, one channel plane at a time -------------------
    h1 = []
    for c in range(C2):
        # fused torch.cat((x, y), dim=1): channels [0, C) from x, [C, 2C) from y
        src = x_ref[0, c] if c < C else y_ref[0, c - C]          # (H, W)
        xpad_ref[1:H + 1, 1:W + 1] = src.astype(f32)             # fused zero-pad
        plane = xpad_ref[...]                                    # (H+2, W+2)
        acc = jnp.zeros((H, W), f32)
        for t in range(9):                                       # 9 shifted FMAs (VPU)
            dy, dx = divmod(t, 3)
            acc = acc + plane[dy:dy + H, dx:dx + W] * pk_ref[c, t]
        h1.append(jnp.maximum(acc + pk_ref[c, 9], 0.0))

    # ---- 1x1 conv C2 -> C (BN1_1 scale pre-folded) + shift + ReLU ----------
    # Channel counts are tiny, so scalar-broadcast FMAs on the VPU beat a
    # lane-starved MXU matmul (and need no reshapes/relayouts).
    h2 = []
    for o in range(C):
        r = C2 + o
        acc = h1[0] * pk_ref[r, 0]
        for c in range(1, C2):
            acc = acc + h1[c] * pk_ref[r, c]
        h2.append(jnp.maximum(acc + pk_ref[r, C2], 0.0))

    # ---- final 1x1 conv C -> Cout + bias, sigmoid (EUP transcendental) -----
    for o in range(Cout):
        r = C2 + C + o
        acc = h2[0] * pk_ref[r, 0]
        for c in range(1, C):
            acc = acc + h2[c] * pk_ref[r, c]
        o_ref[0, o] = jax.nn.sigmoid(acc + pk_ref[r, C]).astype(o_ref.dtype)


def fusion_forward(x_nchw, y_nchw, packed, output_channel):
    """Pallas implementation of FusionModule.forward.  Returns NHWC output."""
    N, C, H, W = x_nchw.shape
    Cout = output_channel

    kernel = functools.partial(_fusion_kernel, C=C, H=H, W=W, Cout=Cout)

    out_nchw = pl.pallas_call(
        kernel,
        out_shape=jax.ShapeDtypeStruct((N, Cout, H, W), x_nchw.dtype),
        grid_spec=pltpu.PrefetchScalarGridSpec(
            num_scalar_prefetch=0,
            grid=(N,),
            in_specs=[
                # packed per-channel params: one tiny table, scalar reads from SMEM
                pl.BlockSpec(memory_space=pltpu.MemorySpace.SMEM),
                pl.BlockSpec((1, C, H, W), lambda n: (n, 0, 0, 0)),
                pl.BlockSpec((1, C, H, W), lambda n: (n, 0, 0, 0)),
            ],
            out_specs=pl.BlockSpec((1, Cout, H, W), lambda n: (n, 0, 0, 0)),
            scratch_shapes=[pltpu.VMEM((H + 2, W + 2), jnp.float32)],
        ),
        compiler_params=pltpu.CompilerParams(
            dimension_semantics=("parallel",),      # batch elements across TCs (v7x)
            vmem_limit_bytes=32 * 1024 * 1024,      # footprint is << 1 MiB per step
        ),
    )(packed, x_nchw, y_nchw)

    # The module's final x.permute(0, 2, 3, 1); only touches the small output.
    return jnp.transpose(out_nchw, (0, 2, 3, 1))


def init_torch_params(key, channel, output_channel):
    """Deterministic init matching FusionModule.__init__ (BN defaults, eval mode)."""
    C, C2, Cout = channel, 2 * channel, output_channel
    k1, k2, k3, k4 = jax.random.split(key, 4)

    # conv1: depthwise 3x3, torch weight (C2, 1, 3, 3), normal(0, sqrt(2/(3*3*C2)))
    wdw_t = jax.random.normal(k1, (C2, 1, 3, 3), jnp.float32) * jnp.sqrt(2.0 / (9 * C2))
    # conv1_1: 1x1, torch weight (C, C2, 1, 1), normal(0, sqrt(2/(1*1*C)))
    w1_t = jax.random.normal(k2, (C, C2, 1, 1), jnp.float32) * jnp.sqrt(2.0 / C)
    # final: 1x1 with bias, torch weight (Cout, C, 1, 1), normal(0, sqrt(2/(1*1*Cout)))
    wf_t = jax.random.normal(k3, (Cout, C, 1, 1), jnp.float32) * jnp.sqrt(2.0 / Cout)
    bound = 1.0 / jnp.sqrt(float(C))
    bf = jax.random.uniform(k4, (Cout,), jnp.float32, -bound, bound)

    # BatchNorms (eval): gamma=1, beta=0, running_mean=0, running_var=1
    bn1 = (jnp.ones(C2), jnp.zeros(C2), jnp.zeros(C2), jnp.ones(C2))
    bn1_1 = (jnp.ones(C), jnp.zeros(C), jnp.zeros(C), jnp.ones(C))
    return dict(wdw=wdw_t, w1=w1_t, wf=wf_t, bf=bf, bn1=bn1, bn1_1=bn1_1)


def pack_params(p, eps=1e-5):
    """Fold BN scales into the conv weights (in fp32) and pack every small
    per-channel parameter into one SMEM-friendly fp32 table."""
    wdw = p["wdw"][:, 0]                           # (C2, 3, 3)
    w1 = p["w1"][:, :, 0, 0]                       # (C, C2)
    wf = p["wf"][:, :, 0, 0]                       # (Cout, C)
    bf = p["bf"]                                   # (Cout,)
    C2, C = wdw.shape[0], w1.shape[0]

    g1, be1, m1, v1 = p["bn1"]
    s1 = g1 / jnp.sqrt(v1 + eps)
    b1 = be1 - m1 * s1
    g2, be2, m2, v2 = p["bn1_1"]
    s2 = g2 / jnp.sqrt(v2 + eps)
    b2 = be2 - m2 * s2

    dw_rows = jnp.concatenate([wdw.reshape(C2, 9) * s1[:, None], b1[:, None]], axis=1)
    c1_rows = jnp.concatenate([w1 * s2[:, None], b2[:, None]], axis=1)
    fin_rows = jnp.concatenate([wf, bf[:, None]], axis=1)

    K = max(dw_rows.shape[1], c1_rows.shape[1], fin_rows.shape[1])
    pad = lambda a: jnp.pad(a, ((0, 0), (0, K - a.shape[1])))
    return jnp.concatenate([pad(dw_rows), pad(c1_rows), pad(fin_rows)], axis=0)


def _bn(h, bn, eps=1e-5):
    g, b, m, v = (a[None, :, None, None] for a in bn)
    return (h - m) / jnp.sqrt(v + eps) * g + b


def ref_forward(x, y, p):
    """Independent pure-JAX/XLA reference using lax.conv (NCHW, like PyTorch)."""
    wdw, w1, wf, bf = p["wdw"], p["w1"], p["wf"], p["bf"]
    C2 = wdw.shape[0]
    dn = ("NCHW", "OIHW", "NCHW")
    h = jnp.concatenate([x, y], axis=1)
    h = lax.conv_general_dilated(h, wdw, (1, 1), "SAME",
                                 feature_group_count=C2, dimension_numbers=dn)
    h = jax.nn.relu(_bn(h, p["bn1"]))
    h = lax.conv_general_dilated(h, w1, (1, 1), "SAME", dimension_numbers=dn)
    h = jax.nn.relu(_bn(h, p["bn1_1"]))
    h = lax.conv_general_dilated(h, wf, (1, 1), "SAME", dimension_numbers=dn)
    h = jax.nn.sigmoid(h + bf[None, :, None, None])
    return jnp.transpose(h, (0, 2, 3, 1))


if __name__ == "__main__":
    N, C, H, W = 2, 4, 16, 16
    Cout = 4

    key = jax.random.PRNGKey(0)
    kx, ky, kp = jax.random.split(key, 3)
    x = jax.random.normal(kx, (N, C, H, W), jnp.float32)
    y = jax.random.normal(ky, (N, C, H, W), jnp.float32)

    p = init_torch_params(kp, C, Cout)
    packed = pack_params(p)

    out = jax.block_until_ready(fusion_forward(x, y, packed, Cout))
    ref = jax.block_until_ready(ref_forward(x, y, p))

    assert out.shape == (N, H, W, Cout)
    err = float(jnp.max(jnp.abs(out - ref)))
    assert jnp.allclose(out, ref, atol=1e-5, rtol=1e-5), err

    print("KERNEL_OK")
</pallas_src>

<mosaic_0001>
module attributes {stable_mosaic.version = 11 : i64} {
  func.func @_fusion_kernel(%arg0: i32, %arg1: memref<16x10xf32, #tpu.memory_space<smem>>, %arg2: memref<1x4x16x16xf32, #tpu.memory_space<vmem>>, %arg3: memref<1x4x16x16xf32, #tpu.memory_space<vmem>>, %arg4: memref<1x4x16x16xf32, #tpu.memory_space<vmem>>, %arg5: memref<18x18xf32, #tpu.memory_space<vmem>>) attributes {dimension_semantics = [#tpu.dimension_semantics<parallel>], iteration_bounds = array<i64: 2>, scalar_prefetch = 0 : i64, scratch_operands = 1 : i64, tpu.core_type = #tpu.core_type<tc>, window_params = [{transform_indices = @transform_0, window_bounds = array<i64: 16, 10>}, {transform_indices = @transform_1, window_bounds = array<i64: 1, 4, 16, 16>}, {transform_indices = @transform_2, window_bounds = array<i64: 1, 4, 16, 16>}, {transform_indices = @transform_3, window_bounds = array<i64: 1, 4, 16, 16>}]} {
    %cst = arith.constant 0.000000e+00 : f32
    %0 = vector.broadcast %cst : f32 to vector<18x18xf32>
    %c0 = arith.constant 0 : index
    %c0_0 = arith.constant 0 : index
    %1 = vector.load %arg5[%c0, %c0_0] : memref<18x18xf32, #tpu.memory_space<vmem>>, vector<18x18xf32>
    tpu.vector_store %arg5[%c0, %c0_0], %0 {strides = array<i32>} : memref<18x18xf32, #tpu.memory_space<vmem>>, vector<18x18xf32>,
    %c0_1 = arith.constant 0 : index
    %c0_2 = arith.constant 0 : index
    %c0_3 = arith.constant 0 : index
    %c0_4 = arith.constant 0 : index
    %2 = vector.load %arg2[%c0_1, %c0_2, %c0_3, %c0_4] : memref<1x4x16x16xf32, #tpu.memory_space<vmem>>, vector<1x1x16x16xf32>
    %3 = vector.shape_cast %2 : vector<1x1x16x16xf32> to vector<16x16xf32>
    %c1 = arith.constant 1 : index
    %c1_5 = arith.constant 1 : index
    %4 = vector.load %arg5[%c1, %c1_5] : memref<18x18xf32, #tpu.memory_space<vmem>>, vector<16x16xf32>
    tpu.vector_store %arg5[%c1, %c1_5], %3 {strides = array<i32>} : memref<18x18xf32, #tpu.memory_space<vmem>>, vector<16x16xf32>,
    %c0_6 = arith.constant 0 : index
    %c0_7 = arith.constant 0 : index
    %5 = vector.load %arg5[%c0_6, %c0_7] : memref<18x18xf32, #tpu.memory_space<vmem>>, vector<18x18xf32>
    %cst_8 = arith.constant 0.000000e+00 : f32
    %6 = vector.broadcast %cst_8 : f32 to vector<16x16xf32>
    %7 = vector.extract_strided_slice %5 {offsets = [0, 0], sizes = [16, 16], strides = [1, 1]} : vector<18x18xf32> to vector<16x16xf32>
    %c0_9 = arith.constant 0 : index
    %c0_10 = arith.constant 0 : index
    %8 = memref.load %arg1[%c0_9, %c0_10] : memref<16x10xf32, #tpu.memory_space<smem>>
    %9 = vector.broadcast %8 : f32 to vector<16x16xf32>
    %10 = arith.mulf %7, %9 : vector<16x16xf32>
    %11 = arith.addf %6, %10 : vector<16x16xf32>
    %12 = vector.extract_strided_slice %5 {offsets = [0, 1], sizes = [16, 16], strides = [1, 1]} : vector<18x18xf32> to vector<16x16xf32>
    %c0_11 = arith.constant 0 : index
    %c1_12 = arith.constant 1 : index
    %13 = memref.load %arg1[%c0_11, %c1_12] : memref<16x10xf32, #tpu.memory_space<smem>>
    %14 = vector.broadcast %13 : f32 to vector<16x16xf32>
    %15 = arith.mulf %12, %14 : vector<16x16xf32>
    %16 = arith.addf %11, %15 : vector<16x16xf32>
    %17 = vector.extract_strided_slice %5 {offsets = [0, 2], sizes = [16, 16], strides = [1, 1]} : vector<18x18xf32> to vector<16x16xf32>
    %c0_13 = arith.constant 0 : index
    %c2 = arith.constant 2 : index
    %18 = memref.load %arg1[%c0_13, %c2] : memref<16x10xf32, #tpu.memory_space<smem>>
    %19 = vector.broadcast %18 : f32 to vector<16x16xf32>
    %20 = arith.mulf %17, %19 : vector<16x16xf32>
    %21 = arith.addf %16, %20 : vector<16x16xf32>
    %22 = vector.extract_strided_slice %5 {offsets = [1, 0], sizes = [16, 16], strides = [1, 1]} : vector<18x18xf32> to vector<16x16xf32>
    %c0_14 = arith.constant 0 : index
    %c3 = arith.constant 3 : index
    %23 = memref.load %arg1[%c0_14, %c3] : memref<16x10xf32, #tpu.memory_space<smem>>
    %24 = vector.broadcast %23 : f32 to vector<16x16xf32>
    %25 = arith.mulf %22, %24 : vector<16x16xf32>
    %26 = arith.addf %21, %25 : vector<16x16xf32>
    %27 = vector.extract_strided_slice %5 {offsets = [1, 1], sizes = [16, 16], strides = [1, 1]} : vector<18x18xf32> to vector<16x16xf32>
    %c0_15 = arith.constant 0 : index
    %c4 = arith.constant 4 : index
    %28 = memref.load %arg1[%c0_15, %c4] : memref<16x10xf32, #tpu.memory_space<smem>>
    %29 = vector.broadcast %28 : f32 to vector<16x16xf32>
    %30 = arith.mulf %27, %29 : vector<16x16xf32>
    %31 = arith.addf %26, %30 : vector<16x16xf32>
    %32 = vector.extract_strided_slice %5 {offsets = [1, 2], sizes = [16, 16], strides = [1, 1]} : vector<18x18xf32> to vector<16x16xf32>
    %c0_16 = arith.constant 0 : index
    %c5 = arith.constant 5 : index
    %33 = memref.load %arg1[%c0_16, %c5] : memref<16x10xf32, #tpu.memory_space<smem>>
    %34 = vector.broadcast %33 : f32 to vector<16x16xf32>
    %35 = arith.mulf %32, %34 : vector<16x16xf32>
    %36 = arith.addf %31, %35 : vector<16x16xf32>
    %37 = vector.extract_strided_slice %5 {offsets = [2, 0], sizes = [16, 16], strides = [1, 1]} : vector<18x18xf32> to vector<16x16xf32>
    %c0_17 = arith.constant 0 : index
    %c6 = arith.constant 6 : index
    %38 = memref.load %arg1[%c0_17, %c6] : memref<16x10xf32, #tpu.memory_space<smem>>
    %39 = vector.broadcast %38 : f32 to vector<16x16xf32>
    %40 = arith.mulf %37, %39 : vector<16x16xf32>
    %41 = arith.addf %36, %40 : vector<16x16xf32>
    %42 = vector.extract_strided_slice %5 {offsets = [2, 1], sizes = [16, 16], strides = [1, 1]} : vector<18x18xf32> to vector<16x16xf32>
    %c0_18 = arith.constant 0 : index
    %c7 = arith.constant 7 : index
    %43 = memref.load %arg1[%c0_18, %c7] : memref<16x10xf32, #tpu.memory_space<smem>>
    %44 = vector.broadcast %43 : f32 to vector<16x16xf32>
    %45 = arith.mulf %42, %44 : vector<16x16xf32>
    %46 = arith.addf %41, %45 : vector<16x16xf32>
    %47 = vector.extract_strided_slice %5 {offsets = [2, 2], sizes = [16, 16], strides = [1, 1]} : vector<18x18xf32> to vector<16x16xf32>
    %c0_19 = arith.constant 0 : index
    %c8 = arith.constant 8 : index
    %48 = memref.load %arg1[%c0_19, %c8] : memref<16x10xf32, #tpu.memory_space<smem>>
    %49 = vector.broadcast %48 : f32 to vector<16x16xf32>
    %50 = arith.mulf %47, %49 : vector<16x16xf32>
    %51 = arith.addf %46, %50 : vector<16x16xf32>
    %c0_20 = arith.constant 0 : index
    %c9 = arith.constant 9 : index
    %52 = memref.load %arg1[%c0_20, %c9] : memref<16x10xf32, #tpu.memory_space<smem>>
    %53 = vector.broadcast %52 : f32 to vector<16x16xf32>
    %54 = arith.addf %51, %53 : vector<16x16xf32>
    %cst_21 = arith.constant 0.000000e+00 : f32
    %55 = vector.broadcast %cst_21 : f32 to vector<16x16xf32>
    %56 = arith.maximumf %54, %55 : vector<16x16xf32>
    %c0_22 = arith.constant 0 : index
    %c1_23 = arith.constant 1 : index
    %c0_24 = arith.constant 0 : index
    %c0_25 = arith.constant 0 : index
    %57 = vector.load %arg2[%c0_22, %c1_23, %c0_24, %c0_25] : memref<1x4x16x16xf32, #tpu.memory_space<vmem>>, vector<1x1x16x16xf32>
    %58 = vector.shape_cast %57 : vector<1x1x16x16xf32> to vector<16x16xf32>
    %c1_26 = arith.constant 1 : index
    %c1_27 = arith.constant 1 : index
    %59 = vector.load %arg5[%c1_26, %c1_27] : memref<18x18xf32, #tpu.memory_space<vmem>>, vector<16x16xf32>
    tpu.vector_store %arg5[%c1_26, %c1_27], %58 {strides = array<i32>} : memref<18x18xf32, #tpu.memory_space<vmem>>, vector<16x16xf32>,
    %c0_28 = arith.constant 0 : index
    %c0_29 = arith.constant 0 : index
    %60 = vector.load %arg5[%c0_28, %c0_29] : memref<18x18xf32, #tpu.memory_space<vmem>>, vector<18x18xf32>
    %cst_30 = arith.constant 0.000000e+00 : f32
    %61 = vector.broadcast %cst_30 : f32 to vector<16x16xf32>
    %62 = vector.extract_strided_slice %60 {offsets = [0, 0], sizes = [16, 16], strides = [1, 1]} : vector<18x18xf32> to vector<16x16xf32>
    %c1_31 = arith.constant 1 : index
    %c0_32 = arith.constant 0 : index
    %63 = memref.load %arg1[%c1_31, %c0_32] : memref<16x10xf32, #tpu.memory_space<smem>>
    %64 = vector.broadcast %63 : f32 to vector<16x16xf32>
    %65 = arith.mulf %62, %64 : vector<16x16xf32>
    %66 = arith.addf %61, %65 : vector<16x16xf32>
    %67 = vector.extract_strided_slice %60 {offsets = [0, 1], sizes = [16, 16], strides = [1, 1]} : vector<18x18xf32> to vector<16x16xf32>
    %c1_33 = arith.constant 1 : index
    %c1_34 = arith.constant 1 : index
    %68 = memref.load %arg1[%c1_33, %c1_34] : memref<16x10xf32, #tpu.memory_space<smem>>
    %69 = vector.broadcast %68 : f32 to vector<16x16xf32>
    %70 = arith.mulf %67, %69 : vector<16x16xf32>
    %71 = arith.addf %66, %70 : vector<16x16xf32>
    %72 = vector.extract_strided_slice %60 {offsets = [0, 2], sizes = [16, 16], strides = [1, 1]} : vector<18x18xf32> to vector<16x16xf32>
    %c1_35 = arith.constant 1 : index
    %c2_36 = arith.constant 2 : index
    %73 = memref.load %arg1[%c1_35, %c2_36] : memref<16x10xf32, #tpu.memory_space<smem>>
    %74 = vector.broadcast %73 : f32 to vector<16x16xf32>
    %75 = arith.mulf %72, %74 : vector<16x16xf32>
    %76 = arith.addf %71, %75 : vector<16x16xf32>
    %77 = vector.extract_strided_slice %60 {offsets = [1, 0], sizes = [16, 16], strides = [1, 1]} : vector<18x18xf32> to vector<16x16xf32>
    %c1_37 = arith.constant 1 : index
    %c3_38 = arith.constant 3 : index
    %78 = memref.load %arg1[%c1_37, %c3_38] : memref<16x10xf32, #tpu.memory_space<smem>>
    %79 = vector.broadcast %78 : f32 to vector<16x16xf32>
    %80 = arith.mulf %77, %79 : vector<16x16xf32>
    %81 = arith.addf %76, %80 : vector<16x16xf32>
    %82 = vector.extract_strided_slice %60 {offsets = [1, 1], sizes = [16, 16], strides = [1, 1]} : vector<18x18xf32> to vector<16x16xf32>
    %c1_39 = arith.constant 1 : index
    %c4_40 = arith.constant 4 : index
    %83 = memref.load %arg1[%c1_39, %c4_40] : memref<16x10xf32, #tpu.memory_space<smem>>
    %84 = vector.broadcast %83 : f32 to vector<16x16xf32>
    %85 = arith.mulf %82, %84 : vector<16x16xf32>
    %86 = arith.addf %81, %85 : vector<16x16xf32>
    %87 = vector.extract_strided_slice %60 {offsets = [1, 2], sizes = [16, 16], strides = [1, 1]} : vector<18x18xf32> to vector<16x16xf32>
    %c1_41 = arith.constant 1 : index
    %c5_42 = arith.constant 5 : index
    %88 = memref.load %arg1[%c1_41, %c5_42] : memref<16x10xf32, #tpu.memory_space<smem>>
    %89 = vector.broadcast %88 : f32 to vector<16x16xf32>
    %90 = arith.mulf %87, %89 : vector<16x16xf32>
    %91 = arith.addf %86, %90 : vector<16x16xf32>
    %92 = vector.extract_strided_slice %60 {offsets = [2, 0], sizes = [16, 16], strides = [1, 1]} : vector<18x18xf32> to vector<16x16xf32>
    %c1_43 = arith.constant 1 : index
    %c6_44 = arith.constant 6 : index
    %93 = memref.load %arg1[%c1_43, %c6_44] : memref<16x10xf32, #tpu.memory_space<smem>>
    %94 = vector.broadcast %93 : f32 to vector<16x16xf32>
    %95 = arith.mulf %92, %94 : vector<16x16xf32>
    %96 = arith.addf %91, %95 : vector<16x16xf32>
    %97 = vector.extract_strided_slice %60 {offsets = [2, 1], sizes = [16, 16], strides = [1, 1]} : vector<18x18xf32> to vector<16x16xf32>
    %c1_45 = arith.constant 1 : index
    %c7_46 = arith.constant 7 : index
    %98 = memref.load %arg1[%c1_45, %c7_46] : memref<16x10xf32, #tpu.memory_space<smem>>
    %99 = vector.broadcast %98 : f32 to vector<16x16xf32>
    %100 = arith.mulf %97, %99 : vector<16x16xf32>
    %101 = arith.addf %96, %100 : vector<16x16xf32>
    %102 = vector.extract_strided_slice %60 {offsets = [2, 2], sizes = [16, 16], strides = [1, 1]} : vector<18x18xf32> to vector<16x16xf32>
    %c1_47 = arith.constant 1 : index
    %c8_48 = arith.constant 8 : index
    %103 = memref.load %arg1[%c1_47, %c8_48] : memref<16x10xf32, #tpu.memory_space<smem>>
    %104 = vector.broadcast %103 : f32 to vector<16x16xf32>
    %105 = arith.mulf %102, %104 : vector<16x16xf32>
    %106 = arith.addf %101, %105 : vector<16x16xf32>
    %c1_49 = arith.constant 1 : index
    %c9_50 = arith.constant 9 : index
    %107 = memref.load %arg1[%c1_49, %c9_50] : memref<16x10xf32, #tpu.memory_space<smem>>
    %108 = vector.broadcast %107 : f32 to vector<16x16xf32>
    %109 = arith.addf %106, %108 : vector<16x16xf32>
    %cst_51 = arith.constant 0.000000e+00 : f32
    %110 = vector.broadcast %cst_51 : f32 to vector<16x16xf32>
    %111 = arith.maximumf %109, %110 : vector<16x16xf32>
    %c0_52 = arith.constant 0 : index
    %c2_53 = arith.constant 2 : index
    %c0_54 = arith.constant 0 : index
    %c0_55 = arith.constant 0 : index
    %112 = vector.load %arg2[%c0_52, %c2_53, %c0_54, %c0_55] : memref<1x4x16x16xf32, #tpu.memory_space<vmem>>, vector<1x1x16x16xf32>
    %113 = vector.shape_cast %112 : vector<1x1x16x16xf32> to vector<16x16xf32>
    %c1_56 = arith.constant 1 : index
    %c1_57 = arith.constant 1 : index
    %114 = vector.load %arg5[%c1_56, %c1_57] : memref<18x18xf32, #tpu.memory_space<vmem>>, vector<16x16xf32>
    tpu.vector_store %arg5[%c1_56, %c1_57], %113 {strides = array<i32>} : memref<18x18xf32, #tpu.memory_space<vmem>>, vector<16x16xf32>,
    %c0_58 = arith.constant 0 : index
    %c0_59 = arith.constant 0 : index
    %115 = vector.load %arg5[%c0_58, %c0_59] : memref<18x18xf32, #tpu.memory_space<vmem>>, vector<18x18xf32>
    %cst_60 = arith.constant 0.000000e+00 : f32
    %116 = vector.broadcast %cst_60 : f32 to vector<16x16xf32>
    %117 = vector.extract_strided_slice %115 {offsets = [0, 0], sizes = [16, 16], strides = [1, 1]} : vector<18x18xf32> to vector<16x16xf32>
    %c2_61 = arith.constant 2 : index
    %c0_62 = arith.constant 0 : index
    %118 = memref.load %arg1[%c2_61, %c0_62] : memref<16x10xf32, #tpu.memory_space<smem>>
    %119 = vector.broadcast %118 : f32 to vector<16x16xf32>
    %120 = arith.mulf %117, %119 : vector<16x16xf32>
    %121 = arith.addf %116, %120 : vector<16x16xf32>
    %122 = vector.extract_strided_slice %115 {offsets = [0, 1], sizes = [16, 16], strides = [1, 1]} : vector<18x18xf32> to vector<16x16xf32>
    %c2_63 = arith.constant 2 : index
    %c1_64 = arith.constant 1 : index
    %123 = memref.load %arg1[%c2_63, %c1_64] : memref<16x10xf32, #tpu.memory_space<smem>>
    %124 = vector.broadcast %123 : f32 to vector<16x16xf32>
    %125 = arith.mulf %122, %124 : vector<16x16xf32>
    %126 = arith.addf %121, %125 : vector<16x16xf32>
    %127 = vector.extract_strided_slice %115 {offsets = [0, 2], sizes = [16, 16], strides = [1, 1]} : vector<18x18xf32> to vector<16x16xf32>
    %c2_65 = arith.constant 2 : index
    %c2_66 = arith.constant 2 : index
    %128 = memref.load %arg1[%c2_65, %c2_66] : memref<16x10xf32, #tpu.memory_space<smem>>
    %129 = vector.broadcast %128 : f32 to vector<16x16xf32>
    %130 = arith.mulf %127, %129 : vector<16x16xf32>
    %131 = arith.addf %126, %130 : vector<16x16xf32>
    %132 = vector.extract_strided_slice %115 {offsets = [1, 0], sizes = [16, 16], strides = [1, 1]} : vector<18x18xf32> to vector<16x16xf32>
    %c2_67 = arith.constant 2 : index
    %c3_68 = arith.constant 3 : index
    %133 = memref.load %arg1[%c2_67, %c3_68] : memref<16x10xf32, #tpu.memory_space<smem>>
    %134 = vector.broadcast %133 : f32 to vector<16x16xf32>
    %135 = arith.mulf %132, %134 : vector<16x16xf32>
    %136 = arith.addf %131, %135 : vector<16x16xf32>
    %137 = vector.extract_strided_slice %115 {offsets = [1, 1], sizes = [16, 16], strides = [1, 1]} : vector<18x18xf32> to vector<16x16xf32>
    %c2_69 = arith.constant 2 : index
    %c4_70 = arith.constant 4 : index
    %138 = memref.load %arg1[%c2_69, %c4_70] : memref<16x10xf32, #tpu.memory_space<smem>>
    %139 = vector.broadcast %138 : f32 to vector<16x16xf32>
    %140 = arith.mulf %137, %139 : vector<16x16xf32>
    %141 = arith.addf %136, %140 : vector<16x16xf32>
    %142 = vector.extract_strided_slice %115 {offsets = [1, 2], sizes = [16, 16], strides = [1, 1]} : vector<18x18xf32> to vector<16x16xf32>
    %c2_71 = arith.constant 2 : index
    %c5_72 = arith.constant 5 : index
    %143 = memref.load %arg1[%c2_71, %c5_72] : memref<16x10xf32, #tpu.memory_space<smem>>
    %144 = vector.broadcast %143 : f32 to vector<16x16xf32>
    %145 = arith.mulf %142, %144 : vector<16x16xf32>
    %146 = arith.addf %141, %145 : vector<16x16xf32>
    %147 = vector.extract_strided_slice %115 {offsets = [2, 0], sizes = [16, 16], strides = [1, 1]} : vector<18x18xf32> to vector<16x16xf32>
    %c2_73 = arith.constant 2 : index
    %c6_74 = arith.constant 6 : index
    %148 = memref.load %arg1[%c2_73, %c6_74] : memref<16x10xf32, #tpu.memory_space<smem>>
    %149 = vector.broadcast %148 : f32 to vector<16x16xf32>
    %150 = arith.mulf %147, %149 : vector<16x16xf32>
    %151 = arith.addf %146, %150 : vector<16x16xf32>
    %152 = vector.extract_strided_slice %115 {offsets = [2, 1], sizes = [16, 16], strides = [1, 1]} : vector<18x18xf32> to vector<16x16xf32>
    %c2_75 = arith.constant 2 : index
    %c7_76 = arith.constant 7 : index
    %153 = memref.load %arg1[%c2_75, %c7_76] : memref<16x10xf32, #tpu.memory_space<smem>>
    %154 = vector.broadcast %153 : f32 to vector<16x16xf32>
    %155 = arith.mulf %152, %154 : vector<16x16xf32>
    %156 = arith.addf %151, %155 : vector<16x16xf32>
    %157 = vector.extract_strided_slice %115 {offsets = [2, 2], sizes = [16, 16], strides = [1, 1]} : vector<18x18xf32> to vector<16x16xf32>
    %c2_77 = arith.constant 2 : index
    %c8_78 = arith.constant 8 : index
    %158 = memref.load %arg1[%c2_77, %c8_78] : memref<16x10xf32, #tpu.memory_space<smem>>
    %159 = vector.broadcast %158 : f32 to vector<16x16xf32>
    %160 = arith.mulf %157, %159 : vector<16x16xf32>
    %161 = arith.addf %156, %160 : vector<16x16xf32>
    %c2_79 = arith.constant 2 : index
    %c9_80 = arith.constant 9 : index
    %162 = memref.load %arg1[%c2_79, %c9_80] : memref<16x10xf32, #tpu.memory_space<smem>>
    %163 = vector.broadcast %162 : f32 to vector<16x16xf32>
    %164 = arith.addf %161, %163 : vector<16x16xf32>
    %cst_81 = arith.constant 0.000000e+00 : f32
    %165 = vector.broadcast %cst_81 : f32 to vector<16x16xf32>
    %166 = arith.maximumf %164, %165 : vector<16x16xf32>
    %c0_82 = arith.constant 0 : index
    %c3_83 = arith.constant 3 : index
    %c0_84 = arith.constant 0 : index
    %c0_85 = arith.constant 0 : index
    %167 = vector.load %arg2[%c0_82, %c3_83, %c0_84, %c0_85] : memref<1x4x16x16xf32, #tpu.memory_space<vmem>>, vector<1x1x16x16xf32>
    %168 = vector.shape_cast %167 : vector<1x1x16x16xf32> to vector<16x16xf32>
    %c1_86 = arith.constant 1 : index
    %c1_87 = arith.constant 1 : index
    %169 = vector.load %arg5[%c1_86, %c1_87] : memref<18x18xf32, #tpu.memory_space<vmem>>, vector<16x16xf32>
    tpu.vector_store %arg5[%c1_86, %c1_87], %168 {strides = array<i32>} : memref<18x18xf32, #tpu.memory_space<vmem>>, vector<16x16xf32>,
    %c0_88 = arith.constant 0 : index
    %c0_89 = arith.constant 0 : index
    %170 = vector.load %arg5[%c0_88, %c0_89] : memref<18x18xf32, #tpu.memory_space<vmem>>, vector<18x18xf32>
    %cst_90 = arith.constant 0.000000e+00 : f32
    %171 = vector.broadcast %cst_90 : f32 to vector<16x16xf32>
    %172 = vector.extract_strided_slice %170 {offsets = [0, 0], sizes = [16, 16], strides = [1, 1]} : vector<18x18xf32> to vector<16x16xf32>
    %c3_91 = arith.constant 3 : index
    %c0_92 = arith.constant 0 : index
    %173 = memref.load %arg1[%c3_91, %c0_92] : memref<16x10xf32, #tpu.memory_space<smem>>
    %174 = vector.broadcast %173 : f32 to vector<16x16xf32>
    %175 = arith.mulf %172, %174 : vector<16x16xf32>
    %176 = arith.addf %171, %175 : vector<16x16xf32>
    %177 = vector.extract_strided_slice %170 {offsets = [0, 1], sizes = [16, 16], strides = [1, 1]} : vector<18x18xf32> to vector<16x16xf32>
    %c3_93 = arith.constant 3 : index
    %c1_94 = arith.constant 1 : index
    %178 = memref.load %arg1[%c3_93, %c1_94] : memref<16x10xf32, #tpu.memory_space<smem>>
    %179 = vector.broadcast %178 : f32 to vector<16x16xf32>
    %180 = arith.mulf %177, %179 : vector<16x16xf32>
    %181 = arith.addf %176, %180 : vector<16x16xf32>
    %182 = vector.extract_strided_slice %170 {offsets = [0, 2], sizes = [16, 16], strides = [1, 1]} : vector<18x18xf32> to vector<16x16xf32>
    %c3_95 = arith.constant 3 : index
    %c2_96 = arith.constant 2 : index
    %183 = memref.load %arg1[%c3_95, %c2_96] : memref<16x10xf32, #tpu.memory_space<smem>>
    %184 = vector.broadcast %183 : f32 to vector<16x16xf32>
    %185 = arith.mulf %182, %184 : vector<16x16xf32>
    %186 = arith.addf %181, %185 : vector<16x16xf32>
    %187 = vector.extract_strided_slice %170 {offsets = [1, 0], sizes = [16, 16], strides = [1, 1]} : vector<18x18xf32> to vector<16x16xf32>
    %c3_97 = arith.constant 3 : index
    %c3_98 = arith.constant 3 : index
    %188 = memref.load %arg1[%c3_97, %c3_98] : memref<16x10xf32, #tpu.memory_space<smem>>
    %189 = vector.broadcast %188 : f32 to vector<16x16xf32>
    %190 = arith.mulf %187, %189 : vector<16x16xf32>
    %191 = arith.addf %186, %190 : vector<16x16xf32>
    %192 = vector.extract_strided_slice %170 {offsets = [1, 1], sizes = [16, 16], strides = [1, 1]} : vector<18x18xf32> to vector<16x16xf32>
    %c3_99 = arith.constant 3 : index
    %c4_100 = arith.constant 4 : index
    %193 = memref.load %arg1[%c3_99, %c4_100] : memref<16x10xf32, #tpu.memory_space<smem>>
    %194 = vector.broadcast %193 : f32 to vector<16x16xf32>
    %195 = arith.mulf %192, %194 : vector<16x16xf32>
    %196 = arith.addf %191, %195 : vector<16x16xf32>
    %197 = vector.extract_strided_slice %170 {offsets = [1, 2], sizes = [16, 16], strides = [1, 1]} : vector<18x18xf32> to vector<16x16xf32>
    %c3_101 = arith.constant 3 : index
    %c5_102 = arith.constant 5 : index
    %198 = memref.load %arg1[%c3_101, %c5_102] : memref<16x10xf32, #tpu.memory_space<smem>>
    %199 = vector.broadcast %198 : f32 to vector<16x16xf32>
    %200 = arith.mulf %197, %199 : vector<16x16xf32>
    %201 = arith.addf %196, %200 : vector<16x16xf32>
    %202 = vector.extract_strided_slice %170 {offsets = [2, 0], sizes = [16, 16], strides = [1, 1]} : vector<18x18xf32> to vector<16x16xf32>
    %c3_103 = arith.constant 3 : index
    %c6_104 = arith.constant 6 : index
    %203 = memref.load %arg1[%c3_103, %c6_104] : memref<16x10xf32, #tpu.memory_space<smem>>
    %204 = vector.broadcast %203 : f32 to vector<16x16xf32>
    %205 = arith.mulf %202, %204 : vector<16x16xf32>
    %206 = arith.addf %201, %205 : vector<16x16xf32>
    %207 = vector.extract_strided_slice %170 {offsets = [2, 1], sizes = [16, 16], strides = [1, 1]} : vector<18x18xf32> to vector<16x16xf32>
    %c3_105 = arith.constant 3 : index
    %c7_106 = arith.constant 7 : index
    %208 = memref.load %arg1[%c3_105, %c7_106] : memref<16x10xf32, #tpu.memory_space<smem>>
    %209 = vector.broadcast %208 : f32 to vector<16x16xf32>
    %210 = arith.mulf %207, %209 : vector<16x16xf32>
    %211 = arith.addf %206, %210 : vector<16x16xf32>
    %212 = vector.extract_strided_slice %170 {offsets = [2, 2], sizes = [16, 16], strides = [1, 1]} : vector<18x18xf32> to vector<16x16xf32>
    %c3_107 = arith.constant 3 : index
    %c8_108 = arith.constant 8 : index
    %213 = memref.load %arg1[%c3_107, %c8_108] : memref<16x10xf32, #tpu.memory_space<smem>>
    %214 = vector.broadcast %213 : f32 to vector<16x16xf32>
    %215 = arith.mulf %212, %214 : vector<16x16xf32>
    %216 = arith.addf %211, %215 : vector<16x16xf32>
    %c3_109 = arith.constant 3 : index
    %c9_110 = arith.constant 9 : index
    %217 = memref.load %arg1[%c3_109, %c9_110] : memref<16x10xf32, #tpu.memory_space<smem>>
    %218 = vector.broadcast %217 : f32 to vector<16x16xf32>
    %219 = arith.addf %216, %218 : vector<16x16xf32>
    %cst_111 = arith.constant 0.000000e+00 : f32
    %220 = vector.broadcast %cst_111 : f32 to vector<16x16xf32>
    %221 = arith.maximumf %219, %220 : vector<16x16xf32>
    %c0_112 = arith.constant 0 : index
    %c0_113 = arith.constant 0 : index
    %c0_114 = arith.constant 0 : index
    %c0_115 = arith.constant 0 : index
    %222 = vector.load %arg3[%c0_112, %c0_113, %c0_114, %c0_115] : memref<1x4x16x16xf32, #tpu.memory_space<vmem>>, vector<1x1x16x16xf32>
    %223 = vector.shape_cast %222 : vector<1x1x16x16xf32> to vector<16x16xf32>
    %c1_116 = arith.constant 1 : index
    %c1_117 = arith.constant 1 : index
    %224 = vector.load %arg5[%c1_116, %c1_117] : memref<18x18xf32, #tpu.memory_space<vmem>>, vector<16x16xf32>
    tpu.vector_store %arg5[%c1_116, %c1_117], %223 {strides = array<i32>} : memref<18x18xf32, #tpu.memory_space<vmem>>, vector<16x16xf32>,
    %c0_118 = arith.constant 0 : index
    %c0_119 = arith.constant 0 : index
    %225 = vector.load %arg5[%c0_118, %c0_119] : memref<18x18xf32, #tpu.memory_space<vmem>>, vector<18x18xf32>
    %cst_120 = arith.constant 0.000000e+00 : f32
    %226 = vector.broadcast %cst_120 : f32 to vector<16x16xf32>
    %227 = vector.extract_strided_slice %225 {offsets = [0, 0], sizes = [16, 16], strides = [1, 1]} : vector<18x18xf32> to vector<16x16xf32>
    %c4_121 = arith.constant 4 : index
    %c0_122 = arith.constant 0 : index
    %228 = memref.load %arg1[%c4_121, %c0_122] : memref<16x10xf32, #tpu.memory_space<smem>>
    %229 = vector.broadcast %228 : f32 to vector<16x16xf32>
    %230 = arith.mulf %227, %229 : vector<16x16xf32>
    %231 = arith.addf %226, %230 : vector<16x16xf32>
    %232 = vector.extract_strided_slice %225 {offsets = [0, 1], sizes = [16, 16], strides = [1, 1]} : vector<18x18xf32> to vector<16x16xf32>
    %c4_123 = arith.constant 4 : index
    %c1_124 = arith.constant 1 : index
    %233 = memref.load %arg1[%c4_123, %c1_124] : memref<16x10xf32, #tpu.memory_space<smem>>
    %234 = vector.broadcast %233 : f32 to vector<16x16xf32>
    %235 = arith.mulf %232, %234 : vector<16x16xf32>
    %236 = arith.addf %231, %235 : vector<16x16xf32>
    %237 = vector.extract_strided_slice %225 {offsets = [0, 2], sizes = [16, 16], strides = [1, 1]} : vector<18x18xf32> to vector<16x16xf32>
    %c4_125 = arith.constant 4 : index
    %c2_126 = arith.constant 2 : index
    %238 = memref.load %arg1[%c4_125, %c2_126] : memref<16x10xf32, #tpu.memory_space<smem>>
    %239 = vector.broadcast %238 : f32 to vector<16x16xf32>
    %240 = arith.mulf %237, %239 : vector<16x16xf32>
    %241 = arith.addf %236, %240 : vector<16x16xf32>
    %242 = vector.extract_strided_slice %225 {offsets = [1, 0], sizes = [16, 16], strides = [1, 1]} : vector<18x18xf32> to vector<16x16xf32>
    %c4_127 = arith.constant 4 : index
    %c3_128 = arith.constant 3 : index
    %243 = memref.load %arg1[%c4_127, %c3_128] : memref<16x10xf32, #tpu.memory_space<smem>>
    %244 = vector.broadcast %243 : f32 to vector<16x16xf32>
    %245 = arith.mulf %242, %244 : vector<16x16xf32>
    %246 = arith.addf %241, %245 : vector<16x16xf32>
    %247 = vector.extract_strided_slice %225 {offsets = [1, 1], sizes = [16, 16], strides = [1, 1]} : vector<18x18xf32> to vector<16x16xf32>
    %c4_129 = arith.constant 4 : index
    %c4_130 = arith.constant 4 : index
    %248 = memref.load %arg1[%c4_129, %c4_130] : memref<16x10xf32, #tpu.memory_space<smem>>
    %249 = vector.broadcast %248 : f32 to vector<16x16xf32>
    %250 = arith.mulf %247, %249 : vector<16x16xf32>
    %251 = arith.addf %246, %250 : vector<16x16xf32>
    %252 = vector.extract_strided_slice %225 {offsets = [1, 2], sizes = [16, 16], strides = [1, 1]} : vector<18x18xf32> to vector<16x16xf32>
    %c4_131 = arith.constant 4 : index
    %c5_132 = arith.constant 5 : index
    %253 = memref.load %arg1[%c4_131, %c5_132] : memref<16x10xf32, #tpu.memory_space<smem>>
    %254 = vector.broadcast %253 : f32 to vector<16x16xf32>
    %255 = arith.mulf %252, %254 : vector<16x16xf32>
    %256 = arith.addf %251, %255 : vector<16x16xf32>
    %257 = vector.extract_strided_slice %225 {offsets = [2, 0], sizes = [16, 16], strides = [1, 1]} : vector<18x18xf32> to vector<16x16xf32>
    %c4_133 = arith.constant 4 : index
    %c6_134 = arith.constant 6 : index
    %258 = memref.load %arg1[%c4_133, %c6_134] : memref<16x10xf32, #tpu.memory_space<smem>>
    %259 = vector.broadcast %258 : f32 to vector<16x16xf32>
    %260 = arith.mulf %257, %259 : vector<16x16xf32>
    %261 = arith.addf %256, %260 : vector<16x16xf32>
    %262 = vector.extract_strided_slice %225 {offsets = [2, 1], sizes = [16, 16], strides = [1, 1]} : vector<18x18xf32> to vector<16x16xf32>
    %c4_135 = arith.constant 4 : index
    %c7_136 = arith.constant 7 : index
    %263 = memref.load %arg1[%c4_135, %c7_136] : memref<16x10xf32, #tpu.memory_space<smem>>
    %264 = vector.broadcast %263 : f32 to vector<16x16xf32>
    %265 = arith.mulf %262, %264 : vector<16x16xf32>
    %266 = arith.addf %261, %265 : vector<16x16xf32>
    %267 = vector.extract_strided_slice %225 {offsets = [2, 2], sizes = [16, 16], strides = [1, 1]} : vector<18x18xf32> to vector<16x16xf32>
    %c4_137 = arith.constant 4 : index
    %c8_138 = arith.constant 8 : index
    %268 = memref.load %arg1[%c4_137, %c8_138] : memref<16x10xf32, #tpu.memory_space<smem>>
    %269 = vector.broadcast %268 : f32 to vector<16x16xf32>
    %270 = arith.mulf %267, %269 : vector<16x16xf32>
    %271 = arith.addf %266, %270 : vector<16x16xf32>
    %c4_139 = arith.constant 4 : index
    %c9_140 = arith.constant 9 : index
    %272 = memref.load %arg1[%c4_139, %c9_140] : memref<16x10xf32, #tpu.memory_space<smem>>
    %273 = vector.broadcast %272 : f32 to vector<16x16xf32>
    %274 = arith.addf %271, %273 : vector<16x16xf32>
    %cst_141 = arith.constant 0.000000e+00 : f32
    %275 = vector.broadcast %cst_141 : f32 to vector<16x16xf32>
    %276 = arith.maximumf %274, %275 : vector<16x16xf32>
    %c0_142 = arith.constant 0 : index
    %c1_143 = arith.constant 1 : index
    %c0_144 = arith.constant 0 : index
    %c0_145 = arith.constant 0 : index
    %277 = vector.load %arg3[%c0_142, %c1_143, %c0_144, %c0_145] : memref<1x4x16x16xf32, #tpu.memory_space<vmem>>, vector<1x1x16x16xf32>
    %278 = vector.shape_cast %277 : vector<1x1x16x16xf32> to vector<16x16xf32>
    %c1_146 = arith.constant 1 : index
    %c1_147 = arith.constant 1 : index
    %279 = vector.load %arg5[%c1_146, %c1_147] : memref<18x18xf32, #tpu.memory_space<vmem>>, vector<16x16xf32>
    tpu.vector_store %arg5[%c1_146, %c1_147], %278 {strides = array<i32>} : memref<18x18xf32, #tpu.memory_space<vmem>>, vector<16x16xf32>,
    %c0_148 = arith.constant 0 : index
    %c0_149 = arith.constant 0 : index
    %280 = vector.load %arg5[%c0_148, %c0_149] : memref<18x18xf32, #tpu.memory_space<vmem>>, vector<18x18xf32>
    %cst_150 = arith.constant 0.000000e+00 : f32
    %281 = vector.broadcast %cst_150 : f32 to vector<16x16xf32>
    %282 = vector.extract_strided_slice %280 {offsets = [0, 0], sizes = [16, 16], strides = [1, 1]} : vector<18x18xf32> to vector<16x16xf32>
    %c5_151 = arith.constant 5 : index
    %c0_152 = arith.constant 0 : index
    %283 = memref.load %arg1[%c5_151, %c0_152] : memref<16x10xf32, #tpu.memory_space<smem>>
    %284 = vector.broadcast %283 : f32 to vector<16x16xf32>
    %285 = arith.mulf %282, %284 : vector<16x16xf32>
    %286 = arith.addf %281, %285 : vector<16x16xf32>
    %287 = vector.extract_strided_slice %280 {offsets = [0, 1], sizes = [16, 16], strides = [1, 1]} : vector<18x18xf32> to vector<16x16xf32>
    %c5_153 = arith.constant 5 : index
    %c1_154 = arith.constant 1 : index
    %288 = memref.load %arg1[%c5_153, %c1_154] : memref<16x10xf32, #tpu.memory_space<smem>>
    %289 = vector.broadcast %288 : f32 to vector<16x16xf32>
    %290 = arith.mulf %287, %289 : vector<16x16xf32>
    %291 = arith.addf %286, %290 : vector<16x16xf32>
    %292 = vector.extract_strided_slice %280 {offsets = [0, 2], sizes = [16, 16], strides = [1, 1]} : vector<18x18xf32> to vector<16x16xf32>
    %c5_155 = arith.constant 5 : index
    %c2_156 = arith.constant 2 : index
    %293 = memref.load %arg1[%c5_155, %c2_156] : memref<16x10xf32, #tpu.memory_space<smem>>
    %294 = vector.broadcast %293 : f32 to vector<16x16xf32>
    %295 = arith.mulf %292, %294 : vector<16x16xf32>
    %296 = arith.addf %291, %295 : vector<16x16xf32>
    %297 = vector.extract_strided_slice %280 {offsets = [1, 0], sizes = [16, 16], strides = [1, 1]} : vector<18x18xf32> to vector<16x16xf32>
    %c5_157 = arith.constant 5 : index
    %c3_158 = arith.constant 3 : index
    %298 = memref.load %arg1[%c5_157, %c3_158] : memref<16x10xf32, #tpu.memory_space<smem>>
    %299 = vector.broadcast %298 : f32 to vector<16x16xf32>
    %300 = arith.mulf %297, %299 : vector<16x16xf32>
    %301 = arith.addf %296, %300 : vector<16x16xf32>
    %302 = vector.extract_strided_slice %280 {offsets = [1, 1], sizes = [16, 16], strides = [1, 1]} : vector<18x18xf32> to vector<16x16xf32>
    %c5_159 = arith.constant 5 : index
    %c4_160 = arith.constant 4 : index
    %303 = memref.load %arg1[%c5_159, %c4_160] : memref<16x10xf32, #tpu.memory_space<smem>>
    %304 = vector.broadcast %303 : f32 to vector<16x16xf32>
    %305 = arith.mulf %302, %304 : vector<16x16xf32>
    %306 = arith.addf %301, %305 : vector<16x16xf32>
    %307 = vector.extract_strided_slice %280 {offsets = [1, 2], sizes = [16, 16], strides = [1, 1]} : vector<18x18xf32> to vector<16x16xf32>
    %c5_161 = arith.constant 5 : index
    %c5_162 = arith.constant 5 : index
    %308 = memref.load %arg1[%c5_161, %c5_162] : memref<16x10xf32, #tpu.memory_space<smem>>
    %309 = vector.broadcast %308 : f32 to vector<16x16xf32>
    %310 = arith.mulf %307, %309 : vector<16x16xf32>
    %311 = arith.addf %306, %310 : vector<16x16xf32>
    %312 = vector.extract_strided_slice %280 {offsets = [2, 0], sizes = [16, 16], strides = [1, 1]} : vector<18x18xf32> to vector<16x16xf32>
    %c5_163 = arith.constant 5 : index
    %c6_164 = arith.constant 6 : index
    %313 = memref.load %arg1[%c5_163, %c6_164] : memref<16x10xf32, #tpu.memory_space<smem>>
    %314 = vector.broadcast %313 : f32 to vector<16x16xf32>
    %315 = arith.mulf %312, %314 : vector<16x16xf32>
    %316 = arith.addf %311, %315 : vector<16x16xf32>
    %317 = vector.extract_strided_slice %280 {offsets = [2, 1], sizes = [16, 16], strides = [1, 1]} : vector<18x18xf32> to vector<16x16xf32>
    %c5_165 = arith.constant 5 : index
    %c7_166 = arith.constant 7 : index
    %318 = memref.load %arg1[%c5_165, %c7_166] : memref<16x10xf32, #tpu.memory_space<smem>>
    %319 = vector.broadcast %318 : f32 to vector<16x16xf32>
    %320 = arith.mulf %317, %319 : vector<16x16xf32>
    %321 = arith.addf %316, %320 : vector<16x16xf32>
    %322 = vector.extract_strided_slice %280 {offsets = [2, 2], sizes = [16, 16], strides = [1, 1]} : vector<18x18xf32> to vector<16x16xf32>
    %c5_167 = arith.constant 5 : index
    %c8_168 = arith.constant 8 : index
    %323 = memref.load %arg1[%c5_167, %c8_168] : memref<16x10xf32, #tpu.memory_space<smem>>
    %324 = vector.broadcast %323 : f32 to vector<16x16xf32>
    %325 = arith.mulf %322, %324 : vector<16x16xf32>
    %326 = arith.addf %321, %325 : vector<16x16xf32>
    %c5_169 = arith.constant 5 : index
    %c9_170 = arith.constant 9 : index
    %327 = memref.load %arg1[%c5_169, %c9_170] : memref<16x10xf32, #tpu.memory_space<smem>>
    %328 = vector.broadcast %327 : f32 to vector<16x16xf32>
    %329 = arith.addf %326, %328 : vector<16x16xf32>
    %cst_171 = arith.constant 0.000000e+00 : f32
    %330 = vector.broadcast %cst_171 : f32 to vector<16x16xf32>
    %331 = arith.maximumf %329, %330 : vector<16x16xf32>
    %c0_172 = arith.constant 0 : index
    %c2_173 = arith.constant 2 : index
    %c0_174 = arith.constant 0 : index
    %c0_175 = arith.constant 0 : index
    %332 = vector.load %arg3[%c0_172, %c2_173, %c0_174, %c0_175] : memref<1x4x16x16xf32, #tpu.memory_space<vmem>>, vector<1x1x16x16xf32>
    %333 = vector.shape_cast %332 : vector<1x1x16x16xf32> to vector<16x16xf32>
    %c1_176 = arith.constant 1 : index
    %c1_177 = arith.constant 1 : index
    %334 = vector.load %arg5[%c1_176, %c1_177] : memref<18x18xf32, #tpu.memory_space<vmem>>, vector<16x16xf32>
    tpu.vector_store %arg5[%c1_176, %c1_177], %333 {strides = array<i32>} : memref<18x18xf32, #tpu.memory_space<vmem>>, vector<16x16xf32>,
    %c0_178 = arith.constant 0 : index
    %c0_179 = arith.constant 0 : index
    %335 = vector.load %arg5[%c0_178, %c0_179] : memref<18x18xf32, #tpu.memory_space<vmem>>, vector<18x18xf32>
    %cst_180 = arith.constant 0.000000e+00 : f32
    %336 = vector.broadcast %cst_180 : f32 to vector<16x16xf32>
    %337 = vector.extract_strided_slice %335 {offsets = [0, 0], sizes = [16, 16], strides = [1, 1]} : vector<18x18xf32> to vector<16x16xf32>
    %c6_181 = arith.constant 6 : index
    %c0_182 = arith.constant 0 : index
    %338 = memref.load %arg1[%c6_181, %c0_182] : memref<16x10xf32, #tpu.memory_space<smem>>
    %339 = vector.broadcast %338 : f32 to vector<16x16xf32>
    %340 = arith.mulf %337, %339 : vector<16x16xf32>
    %341 = arith.addf %336, %340 : vector<16x16xf32>
    %342 = vector.extract_strided_slice %335 {offsets = [0, 1], sizes = [16, 16], strides = [1, 1]} : vector<18x18xf32> to vector<16x16xf32>
    %c6_183 = arith.constant 6 : index
    %c1_184 = arith.constant 1 : index
    %343 = memref.load %arg1[%c6_183, %c1_184] : memref<16x10xf32, #tpu.memory_space<smem>>
    %344 = vector.broadcast %343 : f32 to vector<16x16xf32>
    %345 = arith.mulf %342, %344 : vector<16x16xf32>
    %346 = arith.addf %341, %345 : vector<16x16xf32>
    %347 = vector.extract_strided_slice %335 {offsets = [0, 2], sizes = [16, 16], strides = [1, 1]} : vector<18x18xf32> to vector<16x16xf32>
    %c6_185 = arith.constant 6 : index
    %c2_186 = arith.constant 2 : index
    %348 = memref.load %arg1[%c6_185, %c2_186] : memref<16x10xf32, #tpu.memory_space<smem>>
    %349 = vector.broadcast %348 : f32 to vector<16x16xf32>
    %350 = arith.mulf %347, %349 : vector<16x16xf32>
    %351 = arith.addf %346, %350 : vector<16x16xf32>
    %352 = vector.extract_strided_slice %335 {offsets = [1, 0], sizes = [16, 16], strides = [1, 1]} : vector<18x18xf32> to vector<16x16xf32>
    %c6_187 = arith.constant 6 : index
    %c3_188 = arith.constant 3 : index
    %353 = memref.load %arg1[%c6_187, %c3_188] : memref<16x10xf32, #tpu.memory_space<smem>>
    %354 = vector.broadcast %353 : f32 to vector<16x16xf32>
    %355 = arith.mulf %352, %354 : vector<16x16xf32>
    %356 = arith.addf %351, %355 : vector<16x16xf32>
    %357 = vector.extract_strided_slice %335 {offsets = [1, 1], sizes = [16, 16], strides = [1, 1]} : vector<18x18xf32> to vector<16x16xf32>
    %c6_189 = arith.constant 6 : index
    %c4_190 = arith.constant 4 : index
    %358 = memref.load %arg1[%c6_189, %c4_190] : memref<16x10xf32, #tpu.memory_space<smem>>
    %359 = vector.broadcast %358 : f32 to vector<16x16xf32>
    %360 = arith.mulf %357, %359 : vector<16x16xf32>
    %361 = arith.addf %356, %360 : vector<16x16xf32>
    %362 = vector.extract_strided_slice %335 {offsets = [1, 2], sizes = [16, 16], strides = [1, 1]} : vector<18x18xf32> to vector<16x16xf32>
    %c6_191 = arith.constant 6 : index
    %c5_192 = arith.constant 5 : index
    %363 = memref.load %arg1[%c6_191, %c5_192] : memref<16x10xf32, #tpu.memory_space<smem>>
    %364 = vector.broadcast %363 : f32 to vector<16x16xf32>
    %365 = arith.mulf %362, %364 : vector<16x16xf32>
    %366 = arith.addf %361, %365 : vector<16x16xf32>
    %367 = vector.extract_strided_slice %335 {offsets = [2, 0], sizes = [16, 16], strides = [1, 1]} : vector<18x18xf32> to vector<16x16xf32>
    %c6_193 = arith.constant 6 : index
    %c6_194 = arith.constant 6 : index
    %368 = memref.load %arg1[%c6_193, %c6_194] : memref<16x10xf32, #tpu.memory_space<smem>>
    %369 = vector.broadcast %368 : f32 to vector<16x16xf32>
    %370 = arith.mulf %367, %369 : vector<16x16xf32>
    %371 = arith.addf %366, %370 : vector<16x16xf32>
    %372 = vector.extract_strided_slice %335 {offsets = [2, 1], sizes = [16, 16], strides = [1, 1]} : vector<18x18xf32> to vector<16x16xf32>
    %c6_195 = arith.constant 6 : index
    %c7_196 = arith.constant 7 : index
    %373 = memref.load %arg1[%c6_195, %c7_196] : memref<16x10xf32, #tpu.memory_space<smem>>
    %374 = vector.broadcast %373 : f32 to vector<16x16xf32>
    %375 = arith.mulf %372, %374 : vector<16x16xf32>
    %376 = arith.addf %371, %375 : vector<16x16xf32>
    %377 = vector.extract_strided_slice %335 {offsets = [2, 2], sizes = [16, 16], strides = [1, 1]} : vector<18x18xf32> to vector<16x16xf32>
    %c6_197 = arith.constant 6 : index
    %c8_198 = arith.constant 8 : index
    %378 = memref.load %arg1[%c6_197, %c8_198] : memref<16x10xf32, #tpu.memory_space<smem>>
    %379 = vector.broadcast %378 : f32 to vector<16x16xf32>
    %380 = arith.mulf %377, %379 : vector<16x16xf32>
    %381 = arith.addf %376, %380 : vector<16x16xf32>
    %c6_199 = arith.constant 6 : index
    %c9_200 = arith.constant 9 : index
    %382 = memref.load %arg1[%c6_199, %c9_200] : memref<16x10xf32, #tpu.memory_space<smem>>
    %383 = vector.broadcast %382 : f32 to vector<16x16xf32>
    %384 = arith.addf %381, %383 : vector<16x16xf32>
    %cst_201 = arith.constant 0.000000e+00 : f32
    %385 = vector.broadcast %cst_201 : f32 to vector<16x16xf32>
    %386 = arith.maximumf %384, %385 : vector<16x16xf32>
    %c0_202 = arith.constant 0 : index
    %c3_203 = arith.constant 3 : index
    %c0_204 = arith.constant 0 : index
    %c0_205 = arith.constant 0 : index
    %387 = vector.load %arg3[%c0_202, %c3_203, %c0_204, %c0_205] : memref<1x4x16x16xf32, #tpu.memory_space<vmem>>, vector<1x1x16x16xf32>
    %388 = vector.shape_cast %387 : vector<1x1x16x16xf32> to vector<16x16xf32>
    %c1_206 = arith.constant 1 : index
    %c1_207 = arith.constant 1 : index
    %389 = vector.load %arg5[%c1_206, %c1_207] : memref<18x18xf32, #tpu.memory_space<vmem>>, vector<16x16xf32>
    tpu.vector_store %arg5[%c1_206, %c1_207], %388 {strides = array<i32>} : memref<18x18xf32, #tpu.memory_space<vmem>>, vector<16x16xf32>,
    %c0_208 = arith.constant 0 : index
    %c0_209 = arith.constant 0 : index
    %390 = vector.load %arg5[%c0_208, %c0_209] : memref<18x18xf32, #tpu.memory_space<vmem>>, vector<18x18xf32>
    %cst_210 = arith.constant 0.000000e+00 : f32
    %391 = vector.broadcast %cst_210 : f32 to vector<16x16xf32>
    %392 = vector.extract_strided_slice %390 {offsets = [0, 0], sizes = [16, 16], strides = [1, 1]} : vector<18x18xf32> to vector<16x16xf32>
    %c7_211 = arith.constant 7 : index
    %c0_212 = arith.constant 0 : index
    %393 = memref.load %arg1[%c7_211, %c0_212] : memref<16x10xf32, #tpu.memory_space<smem>>
    %394 = vector.broadcast %393 : f32 to vector<16x16xf32>
    %395 = arith.mulf %392, %394 : vector<16x16xf32>
    %396 = arith.addf %391, %395 : vector<16x16xf32>
    %397 = vector.extract_strided_slice %390 {offsets = [0, 1], sizes = [16, 16], strides = [1, 1]} : vector<18x18xf32> to vector<16x16xf32>
    %c7_213 = arith.constant 7 : index
    %c1_214 = arith.constant 1 : index
    %398 = memref.load %arg1[%c7_213, %c1_214] : memref<16x10xf32, #tpu.memory_space<smem>>
    %399 = vector.broadcast %398 : f32 to vector<16x16xf32>
    %400 = arith.mulf %397, %399 : vector<16x16xf32>
    %401 = arith.addf %396, %400 : vector<16x16xf32>
    %402 = vector.extract_strided_slice %390 {offsets = [0, 2], sizes = [16, 16], strides = [1, 1]} : vector<18x18xf32> to vector<16x16xf32>
    %c7_215 = arith.constant 7 : index
    %c2_216 = arith.constant 2 : index
    %403 = memref.load %arg1[%c7_215, %c2_216] : memref<16x10xf32, #tpu.memory_space<smem>>
    %404 = vector.broadcast %403 : f32 to vector<16x16xf32>
    %405 = arith.mulf %402, %404 : vector<16x16xf32>
    %406 = arith.addf %401, %405 : vector<16x16xf32>
    %407 = vector.extract_strided_slice %390 {offsets = [1, 0], sizes = [16, 16], strides = [1, 1]} : vector<18x18xf32> to vector<16x16xf32>
    %c7_217 = arith.constant 7 : index
    %c3_218 = arith.constant 3 : index
    %408 = memref.load %arg1[%c7_217, %c3_218] : memref<16x10xf32, #tpu.memory_space<smem>>
    %409 = vector.broadcast %408 : f32 to vector<16x16xf32>
    %410 = arith.mulf %407, %409 : vector<16x16xf32>
    %411 = arith.addf %406, %410 : vector<16x16xf32>
    %412 = vector.extract_strided_slice %390 {offsets = [1, 1], sizes = [16, 16], strides = [1, 1]} : vector<18x18xf32> to vector<16x16xf32>
    %c7_219 = arith.constant 7 : index
    %c4_220 = arith.constant 4 : index
    %413 = memref.load %arg1[%c7_219, %c4_220] : memref<16x10xf32, #tpu.memory_space<smem>>
    %414 = vector.broadcast %413 : f32 to vector<16x16xf32>
    %415 = arith.mulf %412, %414 : vector<16x16xf32>
    %416 = arith.addf %411, %415 : vector<16x16xf32>
    %417 = vector.extract_strided_slice %390 {offsets = [1, 2], sizes = [16, 16], strides = [1, 1]} : vector<18x18xf32> to vector<16x16xf32>
    %c7_221 = arith.constant 7 : index
    %c5_222 = arith.constant 5 : index
    %418 = memref.load %arg1[%c7_221, %c5_222] : memref<16x10xf32, #tpu.memory_space<smem>>
    %419 = vector.broadcast %418 : f32 to vector<16x16xf32>
    %420 = arith.mulf %417, %419 : vector<16x16xf32>
    %421 = arith.addf %416, %420 : vector<16x16xf32>
    %422 = vector.extract_strided_slice %390 {offsets = [2, 0], sizes = [16, 16], strides = [1, 1]} : vector<18x18xf32> to vector<16x16xf32>
    %c7_223 = arith.constant 7 : index
    %c6_224 = arith.constant 6 : index
    %423 = memref.load %arg1[%c7_223, %c6_224] : memref<16x10xf32, #tpu.memory_space<smem>>
    %424 = vector.broadcast %423 : f32 to vector<16x16xf32>
    %425 = arith.mulf %422, %424 : vector<16x16xf32>
    %426 = arith.addf %421, %425 : vector<16x16xf32>
    %427 = vector.extract_strided_slice %390 {offsets = [2, 1], sizes = [16, 16], strides = [1, 1]} : vector<18x18xf32> to vector<16x16xf32>
    %c7_225 = arith.constant 7 : index
    %c7_226 = arith.constant 7 : index
    %428 = memref.load %arg1[%c7_225, %c7_226] : memref<16x10xf32, #tpu.memory_space<smem>>
    %429 = vector.broadcast %428 : f32 to vector<16x16xf32>
    %430 = arith.mulf %427, %429 : vector<16x16xf32>
    %431 = arith.addf %426, %430 : vector<16x16xf32>
    %432 = vector.extract_strided_slice %390 {offsets = [2, 2], sizes = [16, 16], strides = [1, 1]} : vector<18x18xf32> to vector<16x16xf32>
    %c7_227 = arith.constant 7 : index
    %c8_228 = arith.constant 8 : index
    %433 = memref.load %arg1[%c7_227, %c8_228] : memref<16x10xf32, #tpu.memory_space<smem>>
    %434 = vector.broadcast %433 : f32 to vector<16x16xf32>
    %435 = arith.mulf %432, %434 : vector<16x16xf32>
    %436 = arith.addf %431, %435 : vector<16x16xf32>
    %c7_229 = arith.constant 7 : index
    %c9_230 = arith.constant 9 : index
    %437 = memref.load %arg1[%c7_229, %c9_230] : memref<16x10xf32, #tpu.memory_space<smem>>
    %438 = vector.broadcast %437 : f32 to vector<16x16xf32>
    %439 = arith.addf %436, %438 : vector<16x16xf32>
    %cst_231 = arith.constant 0.000000e+00 : f32
    %440 = vector.broadcast %cst_231 : f32 to vector<16x16xf32>
    %441 = arith.maximumf %439, %440 : vector<16x16xf32>
    %c8_232 = arith.constant 8 : index
    %c0_233 = arith.constant 0 : index
    %442 = memref.load %arg1[%c8_232, %c0_233] : memref<16x10xf32, #tpu.memory_space<smem>>
    %443 = vector.broadcast %442 : f32 to vector<16x16xf32>
    %444 = arith.mulf %56, %443 : vector<16x16xf32>
    %c8_234 = arith.constant 8 : index
    %c1_235 = arith.constant 1 : index
    %445 = memref.load %arg1[%c8_234, %c1_235] : memref<16x10xf32, #tpu.memory_space<smem>>
    %446 = vector.broadcast %445 : f32 to vector<16x16xf32>
    %447 = arith.mulf %111, %446 : vector<16x16xf32>
    %448 = arith.addf %444, %447 : vector<16x16xf32>
    %c8_236 = arith.constant 8 : index
    %c2_237 = arith.constant 2 : index
    %449 = memref.load %arg1[%c8_236, %c2_237] : memref<16x10xf32, #tpu.memory_space<smem>>
    %450 = vector.broadcast %449 : f32 to vector<16x16xf32>
    %451 = arith.mulf %166, %450 : vector<16x16xf32>
    %452 = arith.addf %448, %451 : vector<16x16xf32>
    %c8_238 = arith.constant 8 : index
    %c3_239 = arith.constant 3 : index
    %453 = memref.load %arg1[%c8_238, %c3_239] : memref<16x10xf32, #tpu.memory_space<smem>>
    %454 = vector.broadcast %453 : f32 to vector<16x16xf32>
    %455 = arith.mulf %221, %454 : vector<16x16xf32>
    %456 = arith.addf %452, %455 : vector<16x16xf32>
    %c8_240 = arith.constant 8 : index
    %c4_241 = arith.constant 4 : index
    %457 = memref.load %arg1[%c8_240, %c4_241] : memref<16x10xf32, #tpu.memory_space<smem>>
    %458 = vector.broadcast %457 : f32 to vector<16x16xf32>
    %459 = arith.mulf %276, %458 : vector<16x16xf32>
    %460 = arith.addf %456, %459 : vector<16x16xf32>
    %c8_242 = arith.constant 8 : index
    %c5_243 = arith.constant 5 : index
    %461 = memref.load %arg1[%c8_242, %c5_243] : memref<16x10xf32, #tpu.memory_space<smem>>
    %462 = vector.broadcast %461 : f32 to vector<16x16xf32>
    %463 = arith.mulf %331, %462 : vector<16x16xf32>
    %464 = arith.addf %460, %463 : vector<16x16xf32>
    %c8_244 = arith.constant 8 : index
    %c6_245 = arith.constant 6 : index
    %465 = memref.load %arg1[%c8_244, %c6_245] : memref<16x10xf32, #tpu.memory_space<smem>>
    %466 = vector.broadcast %465 : f32 to vector<16x16xf32>
    %467 = arith.mulf %386, %466 : vector<16x16xf32>
    %468 = arith.addf %464, %467 : vector<16x16xf32>
    %c8_246 = arith.constant 8 : index
    %c7_247 = arith.constant 7 : index
    %469 = memref.load %arg1[%c8_246, %c7_247] : memref<16x10xf32, #tpu.memory_space<smem>>
    %470 = vector.broadcast %469 : f32 to vector<16x16xf32>
    %471 = arith.mulf %441, %470 : vector<16x16xf32>
    %472 = arith.addf %468, %471 : vector<16x16xf32>
    %c8_248 = arith.constant 8 : index
    %c8_249 = arith.constant 8 : index
    %473 = memref.load %arg1[%c8_248, %c8_249] : memref<16x10xf32, #tpu.memory_space<smem>>
    %474 = vector.broadcast %473 : f32 to vector<16x16xf32>
    %475 = arith.addf %472, %474 : vector<16x16xf32>
    %cst_250 = arith.constant 0.000000e+00 : f32
    %476 = vector.broadcast %cst_250 : f32 to vector<16x16xf32>
    %477 = arith.maximumf %475, %476 : vector<16x16xf32>
    %c9_251 = arith.constant 9 : index
    %c0_252 = arith.constant 0 : index
    %478 = memref.load %arg1[%c9_251, %c0_252] : memref<16x10xf32, #tpu.memory_space<smem>>
    %479 = vector.broadcast %478 : f32 to vector<16x16xf32>
    %480 = arith.mulf %56, %479 : vector<16x16xf32>
    %c9_253 = arith.constant 9 : index
    %c1_254 = arith.constant 1 : index
    %481 = memref.load %arg1[%c9_253, %c1_254] : memref<16x10xf32, #tpu.memory_space<smem>>
    %482 = vector.broadcast %481 : f32 to vector<16x16xf32>
    %483 = arith.mulf %111, %482 : vector<16x16xf32>
    %484 = arith.addf %480, %483 : vector<16x16xf32>
    %c9_255 = arith.constant 9 : index
    %c2_256 = arith.constant 2 : index
    %485 = memref.load %arg1[%c9_255, %c2_256] : memref<16x10xf32, #tpu.memory_space<smem>>
    %486 = vector.broadcast %485 : f32 to vector<16x16xf32>
    %487 = arith.mulf %166, %486 : vector<16x16xf32>
    %488 = arith.addf %484, %487 : vector<16x16xf32>
    %c9_257 = arith.constant 9 : index
    %c3_258 = arith.constant 3 : index
    %489 = memref.load %arg1[%c9_257, %c3_258] : memref<16x10xf32, #tpu.memory_space<smem>>
    %490 = vector.broadcast %489 : f32 to vector<16x16xf32>
    %491 = arith.mulf %221, %490 : vector<16x16xf32>
    %492 = arith.addf %488, %491 : vector<16x16xf32>
    %c9_259 = arith.constant 9 : index
    %c4_260 = arith.constant 4 : index
    %493 = memref.load %arg1[%c9_259, %c4_260] : memref<16x10xf32, #tpu.memory_space<smem>>
    %494 = vector.broadcast %493 : f32 to vector<16x16xf32>
    %495 = arith.mulf %276, %494 : vector<16x16xf32>
    %496 = arith.addf %492, %495 : vector<16x16xf32>
    %c9_261 = arith.constant 9 : index
    %c5_262 = arith.constant 5 : index
    %497 = memref.load %arg1[%c9_261, %c5_262] : memref<16x10xf32, #tpu.memory_space<smem>>
    %498 = vector.broadcast %497 : f32 to vector<16x16xf32>
    %499 = arith.mulf %331, %498 : vector<16x16xf32>
    %500 = arith.addf %496, %499 : vector<16x16xf32>
    %c9_263 = arith.constant 9 : index
    %c6_264 = arith.constant 6 : index
    %501 = memref.load %arg1[%c9_263, %c6_264] : memref<16x10xf32, #tpu.memory_space<smem>>
    %502 = vector.broadcast %501 : f32 to vector<16x16xf32>
    %503 = arith.mulf %386, %502 : vector<16x16xf32>
    %504 = arith.addf %500, %503 : vector<16x16xf32>
    %c9_265 = arith.constant 9 : index
    %c7_266 = arith.constant 7 : index
    %505 = memref.load %arg1[%c9_265, %c7_266] : memref<16x10xf32, #tpu.memory_space<smem>>
    %506 = vector.broadcast %505 : f32 to vector<16x16xf32>
    %507 = arith.mulf %441, %506 : vector<16x16xf32>
    %508 = arith.addf %504, %507 : vector<16x16xf32>
    %c9_267 = arith.constant 9 : index
    %c8_268 = arith.constant 8 : index
    %509 = memref.load %arg1[%c9_267, %c8_268] : memref<16x10xf32, #tpu.memory_space<smem>>
    %510 = vector.broadcast %509 : f32 to vector<16x16xf32>
    %511 = arith.addf %508, %510 : vector<16x16xf32>
    %cst_269 = arith.constant 0.000000e+00 : f32
    %512 = vector.broadcast %cst_269 : f32 to vector<16x16xf32>
    %513 = arith.maximumf %511, %512 : vector<16x16xf32>
    %c10 = arith.constant 10 : index
    %c0_270 = arith.constant 0 : index
    %514 = memref.load %arg1[%c10, %c0_270] : memref<16x10xf32, #tpu.memory_space<smem>>
    %515 = vector.broadcast %514 : f32 to vector<16x16xf32>
    %516 = arith.mulf %56, %515 : vector<16x16xf32>
    %c10_271 = arith.constant 10 : index
    %c1_272 = arith.constant 1 : index
    %517 = memref.load %arg1[%c10_271, %c1_272] : memref<16x10xf32, #tpu.memory_space<smem>>
    %518 = vector.broadcast %517 : f32 to vector<16x16xf32>
    %519 = arith.mulf %111, %518 : vector<16x16xf32>
    %520 = arith.addf %516, %519 : vector<16x16xf32>
    %c10_273 = arith.constant 10 : index
    %c2_274 = arith.constant 2 : index
    %521 = memref.load %arg1[%c10_273, %c2_274] : memref<16x10xf32, #tpu.memory_space<smem>>
    %522 = vector.broadcast %521 : f32 to vector<16x16xf32>
    %523 = arith.mulf %166, %522 : vector<16x16xf32>
    %524 = arith.addf %520, %523 : vector<16x16xf32>
    %c10_275 = arith.constant 10 : index
    %c3_276 = arith.constant 3 : index
    %525 = memref.load %arg1[%c10_275, %c3_276] : memref<16x10xf32, #tpu.memory_space<smem>>
    %526 = vector.broadcast %525 : f32 to vector<16x16xf32>
    %527 = arith.mulf %221, %526 : vector<16x16xf32>
    %528 = arith.addf %524, %527 : vector<16x16xf32>
    %c10_277 = arith.constant 10 : index
    %c4_278 = arith.constant 4 : index
    %529 = memref.load %arg1[%c10_277, %c4_278] : memref<16x10xf32, #tpu.memory_space<smem>>
    %530 = vector.broadcast %529 : f32 to vector<16x16xf32>
    %531 = arith.mulf %276, %530 : vector<16x16xf32>
    %532 = arith.addf %528, %531 : vector<16x16xf32>
    %c10_279 = arith.constant 10 : index
    %c5_280 = arith.constant 5 : index
    %533 = memref.load %arg1[%c10_279, %c5_280] : memref<16x10xf32, #tpu.memory_space<smem>>
    %534 = vector.broadcast %533 : f32 to vector<16x16xf32>
    %535 = arith.mulf %331, %534 : vector<16x16xf32>
    %536 = arith.addf %532, %535 : vector<16x16xf32>
    %c10_281 = arith.constant 10 : index
    %c6_282 = arith.constant 6 : index
    %537 = memref.load %arg1[%c10_281, %c6_282] : memref<16x10xf32, #tpu.memory_space<smem>>
    %538 = vector.broadcast %537 : f32 to vector<16x16xf32>
    %539 = arith.mulf %386, %538 : vector<16x16xf32>
    %540 = arith.addf %536, %539 : vector<16x16xf32>
    %c10_283 = arith.constant 10 : index
    %c7_284 = arith.constant 7 : index
    %541 = memref.load %arg1[%c10_283, %c7_284] : memref<16x10xf32, #tpu.memory_space<smem>>
    %542 = vector.broadcast %541 : f32 to vector<16x16xf32>
    %543 = arith.mulf %441, %542 : vector<16x16xf32>
    %544 = arith.addf %540, %543 : vector<16x16xf32>
    %c10_285 = arith.constant 10 : index
    %c8_286 = arith.constant 8 : index
    %545 = memref.load %arg1[%c10_285, %c8_286] : memref<16x10xf32, #tpu.memory_space<smem>>
    %546 = vector.broadcast %545 : f32 to vector<16x16xf32>
    %547 = arith.addf %544, %546 : vector<16x16xf32>
    %cst_287 = arith.constant 0.000000e+00 : f32
    %548 = vector.broadcast %cst_287 : f32 to vector<16x16xf32>
    %549 = arith.maximumf %547, %548 : vector<16x16xf32>
    %c11 = arith.constant 11 : index
    %c0_288 = arith.constant 0 : index
    %550 = memref.load %arg1[%c11, %c0_288] : memref<16x10xf32, #tpu.memory_space<smem>>
    %551 = vector.broadcast %550 : f32 to vector<16x16xf32>
    %552 = arith.mulf %56, %551 : vector<16x16xf32>
    %c11_289 = arith.constant 11 : index
    %c1_290 = arith.constant 1 : index
    %553 = memref.load %arg1[%c11_289, %c1_290] : memref<16x10xf32, #tpu.memory_space<smem>>
    %554 = vector.broadcast %553 : f32 to vector<16x16xf32>
    %555 = arith.mulf %111, %554 : vector<16x16xf32>
    %556 = arith.addf %552, %555 : vector<16x16xf32>
    %c11_291 = arith.constant 11 : index
    %c2_292 = arith.constant 2 : index
    %557 = memref.load %arg1[%c11_291, %c2_292] : memref<16x10xf32, #tpu.memory_space<smem>>
    %558 = vector.broadcast %557 : f32 to vector<16x16xf32>
    %559 = arith.mulf %166, %558 : vector<16x16xf32>
    %560 = arith.addf %556, %559 : vector<16x16xf32>
    %c11_293 = arith.constant 11 : index
    %c3_294 = arith.constant 3 : index
    %561 = memref.load %arg1[%c11_293, %c3_294] : memref<16x10xf32, #tpu.memory_space<smem>>
    %562 = vector.broadcast %561 : f32 to vector<16x16xf32>
    %563 = arith.mulf %221, %562 : vector<16x16xf32>
    %564 = arith.addf %560, %563 : vector<16x16xf32>
    %c11_295 = arith.constant 11 : index
    %c4_296 = arith.constant 4 : index
    %565 = memref.load %arg1[%c11_295, %c4_296] : memref<16x10xf32, #tpu.memory_space<smem>>
    %566 = vector.broadcast %565 : f32 to vector<16x16xf32>
    %567 = arith.mulf %276, %566 : vector<16x16xf32>
    %568 = arith.addf %564, %567 : vector<16x16xf32>
    %c11_297 = arith.constant 11 : index
    %c5_298 = arith.constant 5 : index
    %569 = memref.load %arg1[%c11_297, %c5_298] : memref<16x10xf32, #tpu.memory_space<smem>>
    %570 = vector.broadcast %569 : f32 to vector<16x16xf32>
    %571 = arith.mulf %331, %570 : vector<16x16xf32>
    %572 = arith.addf %568, %571 : vector<16x16xf32>
    %c11_299 = arith.constant 11 : index
    %c6_300 = arith.constant 6 : index
    %573 = memref.load %arg1[%c11_299, %c6_300] : memref<16x10xf32, #tpu.memory_space<smem>>
    %574 = vector.broadcast %573 : f32 to vector<16x16xf32>
    %575 = arith.mulf %386, %574 : vector<16x16xf32>
    %576 = arith.addf %572, %575 : vector<16x16xf32>
    %c11_301 = arith.constant 11 : index
    %c7_302 = arith.constant 7 : index
    %577 = memref.load %arg1[%c11_301, %c7_302] : memref<16x10xf32, #tpu.memory_space<smem>>
    %578 = vector.broadcast %577 : f32 to vector<16x16xf32>
    %579 = arith.mulf %441, %578 : vector<16x16xf32>
    %580 = arith.addf %576, %579 : vector<16x16xf32>
    %c11_303 = arith.constant 11 : index
    %c8_304 = arith.constant 8 : index
    %581 = memref.load %arg1[%c11_303, %c8_304] : memref<16x10xf32, #tpu.memory_space<smem>>
    %582 = vector.broadcast %581 : f32 to vector<16x16xf32>
    %583 = arith.addf %580, %582 : vector<16x16xf32>
    %cst_305 = arith.constant 0.000000e+00 : f32
    %584 = vector.broadcast %cst_305 : f32 to vector<16x16xf32>
    %585 = arith.maximumf %583, %584 : vector<16x16xf32>
    %c12 = arith.constant 12 : index
    %c0_306 = arith.constant 0 : index
    %586 = memref.load %arg1[%c12, %c0_306] : memref<16x10xf32, #tpu.memory_space<smem>>
    %587 = vector.broadcast %586 : f32 to vector<16x16xf32>
    %588 = arith.mulf %477, %587 : vector<16x16xf32>
    %c12_307 = arith.constant 12 : index
    %c1_308 = arith.constant 1 : index
    %589 = memref.load %arg1[%c12_307, %c1_308] : memref<16x10xf32, #tpu.memory_space<smem>>
    %590 = vector.broadcast %589 : f32 to vector<16x16xf32>
    %591 = arith.mulf %513, %590 : vector<16x16xf32>
    %592 = arith.addf %588, %591 : vector<16x16xf32>
    %c12_309 = arith.constant 12 : index
    %c2_310 = arith.constant 2 : index
    %593 = memref.load %arg1[%c12_309, %c2_310] : memref<16x10xf32, #tpu.memory_space<smem>>
    %594 = vector.broadcast %593 : f32 to vector<16x16xf32>
    %595 = arith.mulf %549, %594 : vector<16x16xf32>
    %596 = arith.addf %592, %595 : vector<16x16xf32>
    %c12_311 = arith.constant 12 : index
    %c3_312 = arith.constant 3 : index
    %597 = memref.load %arg1[%c12_311, %c3_312] : memref<16x10xf32, #tpu.memory_space<smem>>
    %598 = vector.broadcast %597 : f32 to vector<16x16xf32>
    %599 = arith.mulf %585, %598 : vector<16x16xf32>
    %600 = arith.addf %596, %599 : vector<16x16xf32>
    %c12_313 = arith.constant 12 : index
    %c4_314 = arith.constant 4 : index
    %601 = memref.load %arg1[%c12_313, %c4_314] : memref<16x10xf32, #tpu.memory_space<smem>>
    %602 = vector.broadcast %601 : f32 to vector<16x16xf32>
    %603 = arith.addf %600, %602 : vector<16x16xf32>
    %604 = arith.negf %603 : vector<16x16xf32>
    %605 = math.exp %604 : vector<16x16xf32>
    %cst_315 = arith.constant 1.000000e+00 : f32
    %606 = vector.broadcast %cst_315 : f32 to vector<16x16xf32>
    %607 = arith.addf %606, %605 : vector<16x16xf32>
    %608 = arith.divf %606, %607 : vector<16x16xf32>
    %c0_316 = arith.constant 0 : index
    %c0_317 = arith.constant 0 : index
    %c0_318 = arith.constant 0 : index
    %c0_319 = arith.constant 0 : index
    %609 = vector.load %arg4[%c0_316, %c0_317, %c0_318, %c0_319] : memref<1x4x16x16xf32, #tpu.memory_space<vmem>>, vector<1x1x16x16xf32>
    %610 = vector.shape_cast %609 : vector<1x1x16x16xf32> to vector<16x16xf32>
    %611 = vector.shape_cast %608 : vector<16x16xf32> to vector<1x1x16x16xf32>
    tpu.vector_store %arg4[%c0_316, %c0_317, %c0_318, %c0_319], %611 {strides = array<i32>} : memref<1x4x16x16xf32, #tpu.memory_space<vmem>>, vector<1x1x16x16xf32>,
    %c13 = arith.constant 13 : index
    %c0_320 = arith.constant 0 : index
    %612 = memref.load %arg1[%c13, %c0_320] : memref<16x10xf32, #tpu.memory_space<smem>>
    %613 = vector.broadcast %612 : f32 to vector<16x16xf32>
    %614 = arith.mulf %477, %613 : vector<16x16xf32>
    %c13_321 = arith.constant 13 : index
    %c1_322 = arith.constant 1 : index
    %615 = memref.load %arg1[%c13_321, %c1_322] : memref<16x10xf32, #tpu.memory_space<smem>>
    %616 = vector.broadcast %615 : f32 to vector<16x16xf32>
    %617 = arith.mulf %513, %616 : vector<16x16xf32>
    %618 = arith.addf %614, %617 : vector<16x16xf32>
    %c13_323 = arith.constant 13 : index
    %c2_324 = arith.constant 2 : index
    %619 = memref.load %arg1[%c13_323, %c2_324] : memref<16x10xf32, #tpu.memory_space<smem>>
    %620 = vector.broadcast %619 : f32 to vector<16x16xf32>
    %621 = arith.mulf %549, %620 : vector<16x16xf32>
    %622 = arith.addf %618, %621 : vector<16x16xf32>
    %c13_325 = arith.constant 13 : index
    %c3_326 = arith.constant 3 : index
    %623 = memref.load %arg1[%c13_325, %c3_326] : memref<16x10xf32, #tpu.memory_space<smem>>
    %624 = vector.broadcast %623 : f32 to vector<16x16xf32>
    %625 = arith.mulf %585, %624 : vector<16x16xf32>
    %626 = arith.addf %622, %625 : vector<16x16xf32>
    %c13_327 = arith.constant 13 : index
    %c4_328 = arith.constant 4 : index
    %627 = memref.load %arg1[%c13_327, %c4_328] : memref<16x10xf32, #tpu.memory_space<smem>>
    %628 = vector.broadcast %627 : f32 to vector<16x16xf32>
    %629 = arith.addf %626, %628 : vector<16x16xf32>
    %630 = arith.negf %629 : vector<16x16xf32>
    %631 = math.exp %630 : vector<16x16xf32>
    %cst_329 = arith.constant 1.000000e+00 : f32
    %632 = vector.broadcast %cst_329 : f32 to vector<16x16xf32>
    %633 = arith.addf %632, %631 : vector<16x16xf32>
    %634 = arith.divf %632, %633 : vector<16x16xf32>
    %c0_330 = arith.constant 0 : index
    %c1_331 = arith.constant 1 : index
    %c0_332 = arith.constant 0 : index
    %c0_333 = arith.constant 0 : index
    %635 = vector.load %arg4[%c0_330, %c1_331, %c0_332, %c0_333] : memref<1x4x16x16xf32, #tpu.memory_space<vmem>>, vector<1x1x16x16xf32>
    %636 = vector.shape_cast %635 : vector<1x1x16x16xf32> to vector<16x16xf32>
    %637 = vector.shape_cast %634 : vector<16x16xf32> to vector<1x1x16x16xf32>
    tpu.vector_store %arg4[%c0_330, %c1_331, %c0_332, %c0_333], %637 {strides = array<i32>} : memref<1x4x16x16xf32, #tpu.memory_space<vmem>>, vector<1x1x16x16xf32>,
    %c14 = arith.constant 14 : index
    %c0_334 = arith.constant 0 : index
    %638 = memref.load %arg1[%c14, %c0_334] : memref<16x10xf32, #tpu.memory_space<smem>>
    %639 = vector.broadcast %638 : f32 to vector<16x16xf32>
    %640 = arith.mulf %477, %639 : vector<16x16xf32>
    %c14_335 = arith.constant 14 : index
    %c1_336 = arith.constant 1 : index
    %641 = memref.load %arg1[%c14_335, %c1_336] : memref<16x10xf32, #tpu.memory_space<smem>>
    %642 = vector.broadcast %641 : f32 to vector<16x16xf32>
    %643 = arith.mulf %513, %642 : vector<16x16xf32>
    %644 = arith.addf %640, %643 : vector<16x16xf32>
    %c14_337 = arith.constant 14 : index
    %c2_338 = arith.constant 2 : index
    %645 = memref.load %arg1[%c14_337, %c2_338] : memref<16x10xf32, #tpu.memory_space<smem>>
    %646 = vector.broadcast %645 : f32 to vector<16x16xf32>
    %647 = arith.mulf %549, %646 : vector<16x16xf32>
    %648 = arith.addf %644, %647 : vector<16x16xf32>
    %c14_339 = arith.constant 14 : index
    %c3_340 = arith.constant 3 : index
    %649 = memref.load %arg1[%c14_339, %c3_340] : memref<16x10xf32, #tpu.memory_space<smem>>
    %650 = vector.broadcast %649 : f32 to vector<16x16xf32>
    %651 = arith.mulf %585, %650 : vector<16x16xf32>
    %652 = arith.addf %648, %651 : vector<16x16xf32>
    %c14_341 = arith.constant 14 : index
    %c4_342 = arith.constant 4 : index
    %653 = memref.load %arg1[%c14_341, %c4_342] : memref<16x10xf32, #tpu.memory_space<smem>>
    %654 = vector.broadcast %653 : f32 to vector<16x16xf32>
    %655 = arith.addf %652, %654 : vector<16x16xf32>
    %656 = arith.negf %655 : vector<16x16xf32>
    %657 = math.exp %656 : vector<16x16xf32>
    %cst_343 = arith.constant 1.000000e+00 : f32
    %658 = vector.broadcast %cst_343 : f32 to vector<16x16xf32>
    %659 = arith.addf %658, %657 : vector<16x16xf32>
    %660 = arith.divf %658, %659 : vector<16x16xf32>
    %c0_344 = arith.constant 0 : index
    %c2_345 = arith.constant 2 : index
    %c0_346 = arith.constant 0 : index
    %c0_347 = arith.constant 0 : index
    %661 = vector.load %arg4[%c0_344, %c2_345, %c0_346, %c0_347] : memref<1x4x16x16xf32, #tpu.memory_space<vmem>>, vector<1x1x16x16xf32>
    %662 = vector.shape_cast %661 : vector<1x1x16x16xf32> to vector<16x16xf32>
    %663 = vector.shape_cast %660 : vector<16x16xf32> to vector<1x1x16x16xf32>
    tpu.vector_store %arg4[%c0_344, %c2_345, %c0_346, %c0_347], %663 {strides = array<i32>} : memref<1x4x16x16xf32, #tpu.memory_space<vmem>>, vector<1x1x16x16xf32>,
    %c15 = arith.constant 15 : index
    %c0_348 = arith.constant 0 : index
    %664 = memref.load %arg1[%c15, %c0_348] : memref<16x10xf32, #tpu.memory_space<smem>>
    %665 = vector.broadcast %664 : f32 to vector<16x16xf32>
    %666 = arith.mulf %477, %665 : vector<16x16xf32>
    %c15_349 = arith.constant 15 : index
    %c1_350 = arith.constant 1 : index
    %667 = memref.load %arg1[%c15_349, %c1_350] : memref<16x10xf32, #tpu.memory_space<smem>>
    %668 = vector.broadcast %667 : f32 to vector<16x16xf32>
    %669 = arith.mulf %513, %668 : vector<16x16xf32>
    %670 = arith.addf %666, %669 : vector<16x16xf32>
    %c15_351 = arith.constant 15 : index
    %c2_352 = arith.constant 2 : index
    %671 = memref.load %arg1[%c15_351, %c2_352] : memref<16x10xf32, #tpu.memory_space<smem>>
    %672 = vector.broadcast %671 : f32 to vector<16x16xf32>
    %673 = arith.mulf %549, %672 : vector<16x16xf32>
    %674 = arith.addf %670, %673 : vector<16x16xf32>
    %c15_353 = arith.constant 15 : index
    %c3_354 = arith.constant 3 : index
    %675 = memref.load %arg1[%c15_353, %c3_354] : memref<16x10xf32, #tpu.memory_space<smem>>
    %676 = vector.broadcast %675 : f32 to vector<16x16xf32>
    %677 = arith.mulf %585, %676 : vector<16x16xf32>
    %678 = arith.addf %674, %677 : vector<16x16xf32>
    %c15_355 = arith.constant 15 : index
    %c4_356 = arith.constant 4 : index
    %679 = memref.load %arg1[%c15_355, %c4_356] : memref<16x10xf32, #tpu.memory_space<smem>>
    %680 = vector.broadcast %679 : f32 to vector<16x16xf32>
    %681 = arith.addf %678, %680 : vector<16x16xf32>
    %682 = arith.negf %681 : vector<16x16xf32>
    %683 = math.exp %682 : vector<16x16xf32>
    %cst_357 = arith.constant 1.000000e+00 : f32
    %684 = vector.broadcast %cst_357 : f32 to vector<16x16xf32>
    %685 = arith.addf %684, %683 : vector<16x16xf32>
    %686 = arith.divf %684, %685 : vector<16x16xf32>
    %c0_358 = arith.constant 0 : index
    %c3_359 = arith.constant 3 : index
    %c0_360 = arith.constant 0 : index
    %c0_361 = arith.constant 0 : index
    %687 = vector.load %arg4[%c0_358, %c3_359, %c0_360, %c0_361] : memref<1x4x16x16xf32, #tpu.memory_space<vmem>>, vector<1x1x16x16xf32>
    %688 = vector.shape_cast %687 : vector<1x1x16x16xf32> to vector<16x16xf32>
    %689 = vector.shape_cast %686 : vector<16x16xf32> to vector<1x1x16x16xf32>
    tpu.vector_store %arg4[%c0_358, %c3_359, %c0_360, %c0_361], %689 {strides = array<i32>} : memref<1x4x16x16xf32, #tpu.memory_space<vmem>>, vector<1x1x16x16xf32>,
    return
  }
  func.func @transform_0(%arg0: i32) -> (i32, i32) {
    %c0_i32 = arith.constant 0 : i32
    %c0_i32_0 = arith.constant 0 : i32
    %c0_i32_1 = arith.constant 0 : i32
    return %c0_i32, %c0_i32_0 : i32, i32
  }
  func.func @transform_1(%arg0: i32) -> (i32, i32, i32, i32) {
    %c0_i32 = arith.constant 0 : i32
    %c0_i32_0 = arith.constant 0 : i32
    %c0_i32_1 = arith.constant 0 : i32
    %c0_i32_2 = arith.constant 0 : i32
    return %arg0, %c0_i32, %c0_i32_0, %c0_i32_1 : i32, i32, i32, i32
  }
  func.func @transform_2(%arg0: i32) -> (i32, i32, i32, i32) {
    %c0_i32 = arith.constant 0 : i32
    %c0_i32_0 = arith.constant 0 : i32
    %c0_i32_1 = arith.constant 0 : i32
    %c0_i32_2 = arith.constant 0 : i32
    return %arg0, %c0_i32, %c0_i32_0, %c0_i32_1 : i32, i32, i32, i32
  }
  func.func @transform_3(%arg0: i32) -> (i32, i32, i32, i32) {
    %c0_i32 = arith.constant 0 : i32
    %c0_i32_0 = arith.constant 0 : i32
    %c0_i32_1 = arith.constant 0 : i32
    %c0_i32_2 = arith.constant 0 : i32
    return %arg0, %c0_i32, %c0_i32_0, %c0_i32_1 : i32, i32, i32, i32
  }
}

</mosaic_0001>

<llo_original>
// kernel: tpu_custom_call.1
$region0: #{tpu_custom_call.1}
  #allocation0 [shape = 'u32[]', space=smem, size = 0x4, offset = 0x4, fixed_abs, tag = 'smem constant byte address 0x4 - core index']
  #allocation1 [shape = 'u32[144,128]{1,0:T(1,128)}', space=vmem, size = 0x12000, scoped, tag = 'internal scratch']
  #allocation2 [shape = 'f32[18,18]{1,0:T(8,128)}', space=vmem, size = 0x3000, scoped, tag = 'scratch operand']
  %s0 = inlined_call_operand.hbm [shape: f32[16,10], index: 0, kind: input, shape index: {}]
  %s1 = inlined_call_operand.hbm [shape: f32[2,4,16,16], index: 1, kind: input, shape index: {}]
  %s2 = inlined_call_operand.hbm [shape: f32[2,4,16,16], index: 2, kind: input, shape index: {}]
  %s3 = inlined_call_operand.hbm [shape: f32[2,4,16,16], index: 3, kind: output, shape index: {}]
  %s4 = sld [smem:[#allocation0]]
  $region57: #{tpu_custom_call.1} parent=0
    _
  %s6 = ssub.s32 1, %s4
  %s7 = scalar_select 0, %s6, %s4
  $region1: #{tpu_custom_call.1} parent=0
    #allocation3 [shape = 'u8[8192]{0}', space=smem, size = 0x2000, scoped, tag = 'input window, operand 0, single buffered']
    #allocation4 [shape = 's32[2]{0}', space=sflag, size = 0x8, scoped, tag = 'scoped memory for tpu_custom_call.1']
    #allocation5 [shape = 's32[2]{0}', space=sflag, size = 0x8, scoped, tag = 'scoped memory for tpu_custom_call.1']
    #allocation6 [shape = 's32[2]{0}', space=sflag, size = 0x8, scoped, tag = 'scoped memory for tpu_custom_call.1']
    #allocation7 [shape = 'u8[65536]{0}', space=vmem, size = 0x10000, scoped, tag = 'input window, operand 1']
    #allocation8 [shape = 'u8[65536]{0}', space=vmem, size = 0x10000, scoped, tag = 'input window, operand 2']
    #allocation9 [shape = 's32[2]{0}', space=sflag, size = 0x8, scoped, tag = 'scoped memory for tpu_custom_call.1']
    #allocation10 [shape = 'u8[65536]{0}', space=vmem, size = 0x10000, scoped, tag = 'output window, operand 0']
    %8 = vsyncpa [#allocation6], 0
    %9 = vsyncpa [#allocation4], 0
    %s10 = scalar_lea.sflag [#allocation4], 1
    %11 = vsyncpa %s10, 0
    %12 = vsyncpa [#allocation9], 0
    %s13 = scalar_lea.sflag [#allocation9], 1
    %14 = vsyncpa %s13, 0
    %15 = vsyncpa [#allocation5], 0
    %s16 = scalar_lea.sflag [#allocation5], 1
    %17 = vsyncpa %s16, 0
    loop: start=0, step=1, limit=4
    $region2: #{tpu_custom_call.1} parent=1 // loop_pre_header
      _
    $region3: #{tpu_custom_call.1} parent=1 // loop_header
      %s19 = sphi 0, %s23
      %p20 = scmp.ge.s32.totalorder %s19, 4
      %s27 = sphi 0, %s27
      %s29 = sphi 0, %s27
      %s30 = sphi 0, %s29
      %s44 = sphi 0, %s30
      %s50 = sphi 0, %s52
      %s53 = sphi 0, %s50
      %s54 = sphi 0, %s53
      %s70 = sphi 0, %s54
      %s76 = sphi 0, %s78
      %s79 = sphi 0, %s76
      %s80 = sphi 0, %s79
      %s96 = sphi 0, %s80
      %s102 = sphi 0, %s104
      %s105 = sphi 0, %s102
      %s106 = sphi 0, %s105
      %s122 = sphi 0, %s106
    $region4: #{tpu_custom_call.1} parent=1 // loop_header_branch
      %22 = sbr.rel (%p20) target = $region8
    $region5: #{tpu_custom_call.1} parent=1 // loop_body
      %s24 = ssub.s32 %s19, 1
      %s25 = ssub.s32 %s19, 2
      %s26 = sadd.s32 %s19, 1
      %s28 = sadd.s32 %s27, 1
      %p31 = scmp.eq.s32.totalorder %s19, 1
      %p32 = scmp.ne.s32.totalorder %s27, %s29
      %p33 = scmp.eq.s32.totalorder %s19, 0
      %p34 = por %p32, %p33
      %p35 = scmp.ne.s32.totalorder %s27, %s29
      %p36 = scmp.eq.s32.totalorder %s24, 1
      %p37 = por %p35, %p36
      %p38 = scmp.ne.s32.totalorder %s29, %s30
      %p39 = scmp.eq.s32.totalorder %s24, 0
      %p40 = por %p38, %p39
      %p41 = scmp.ne.s32.totalorder %s29, %s30
      %p42 = scmp.eq.s32.totalorder %s25, 1
      %p43 = por %p41, %p42
      %p45 = scmp.ne.s32.totalorder %s30, %s44
      %p46 = scmp.eq.s32.totalorder %s25, 0
      %p47 = por %p45, %p46
      %s48 = ssub.s32 %s19, %s26
      %p49 = scmp.eq.s32.totalorder %s48, 0
      %s51 = sadd.s32 %s50, 1
      %s52 = scalar_select %p49, %s50, %s51
      %p55 = pneg %p49
      %p56 = scmp.eq.s32.totalorder %s19, 1
      %p57 = por %p55, %p56
      %p58 = scmp.ne.s32.totalorder %s50, %s53
      %p59 = scmp.eq.s32.totalorder %s19, 0
      %p60 = por %p58, %p59
      %p61 = scmp.ne.s32.totalorder %s50, %s53
      %p62 = scmp.eq.s32.totalorder %s24, 1
      %p63 = por %p61, %p62
      %p64 = scmp.ne.s32.totalorder %s53, %s54
      %p65 = scmp.eq.s32.totalorder %s24, 0
      %p66 = por %p64, %p65
      %p67 = scmp.ne.s32.totalorder %s53, %s54
      %p68 = scmp.eq.s32.totalorder %s25, 1
      %p69 = por %p67, %p68
      %p71 = scmp.ne.s32.totalorder %s54, %s70
      %p72 = scmp.eq.s32.totalorder %s25, 0
      %p73 = por %p71, %p72
      %s74 = ssub.s32 %s19, %s26
      %p75 = scmp.eq.s32.totalorder %s74, 0
      %s77 = sadd.s32 %s76, 1
      %s78 = scalar_select %p75, %s76, %s77
      %p81 = pneg %p75
      %p82 = scmp.eq.s32.totalorder %s19, 1
      %p83 = por %p81, %p82
      %p84 = scmp.ne.s32.totalorder %s76, %s79
      %p85 = scmp.eq.s32.totalorder %s19, 0
      %p86 = por %p84, %p85
      %p87 = scmp.ne.s32.totalorder %s76, %s79
      %p88 = scmp.eq.s32.totalorder %s24, 1
      %p89 = por %p87, %p88
      %p90 = scmp.ne.s32.totalorder %s79, %s80
      %p91 = scmp.eq.s32.totalorder %s24, 0
      %p92 = por %p90, %p91
      %p93 = scmp.ne.s32.totalorder %s79, %s80
      %p94 = scmp.eq.s32.totalorder %s25, 1
      %p95 = por %p93, %p94
      %p97 = scmp.ne.s32.totalorder %s80, %s96
      %p98 = scmp.eq.s32.totalorder %s25, 0
      %p99 = por %p97, %p98
      %s100 = ssub.s32 %s19, %s26
      %p101 = scmp.eq.s32.totalorder %s100, 0
      %s103 = sadd.s32 %s102, 1
      %s104 = scalar_select %p101, %s102, %s103
      %p107 = pneg %p101
      %p108 = scmp.eq.s32.totalorder %s19, 1
      %p109 = por %p107, %p108
      %p110 = scmp.ne.s32.totalorder %s102, %s105
      %p111 = scmp.eq.s32.totalorder %s19, 0
      %p112 = por %p110, %p111
      %p113 = scmp.ne.s32.totalorder %s102, %s105
      %p114 = scmp.eq.s32.totalorder %s24, 1
      %p115 = por %p113, %p114
      %p116 = scmp.ne.s32.totalorder %s105, %s106
      %p117 = scmp.eq.s32.totalorder %s24, 0
      %p118 = por %p116, %p117
      %p119 = scmp.ne.s32.totalorder %s105, %s106
      %p120 = scmp.eq.s32.totalorder %s25, 1
      %p121 = por %p119, %p120
      %p123 = scmp.ne.s32.totalorder %s106, %s122
      %p124 = scmp.eq.s32.totalorder %s25, 0
      %p125 = por %p123, %p124
      %p126 = scmp.le.s32.totalorder 1, %s19
      %p127 = scmp.lt.s32.totalorder %s19, 3
      %p128 = pnand %p126, %p127
      %p129 = pneg %p128
      // Predicated region
      $region9: #{tpu_custom_call.1} parent=5 // pred_check
        _
      $region10: #{tpu_custom_call.1} parent=5 // pred_check_branch
        %131 = sbr.rel (%p128) target = $region12
      $region11: #{tpu_custom_call.1} parent=5 // pred_region
        %s132 = ssub.s32 %s19, 1
        // Predicated region
        $region13: #{tpu_custom_call.1} parent=11 // pred_check
          %p133 = pneg %p40
        $region14: #{tpu_custom_call.1} parent=11 // pred_check_branch
          %135 = sbr.rel (%p133) target = $region16
        $region15: #{tpu_custom_call.1} parent=11 // pred_region
          %s137 = ssub.s32 256, 256
          %138 = vsyncadd [#allocation6], %s137
          %143 = dma.hbm_to_smem %s0, 256, [#allocation3], [#allocation6], 128, 128, 8
        $region16: #{tpu_custom_call.1} parent=11 // pred_fallthru
          _
      $region12: #{tpu_custom_call.1} parent=5 // pred_fallthru
        _
      %p144 = scmp.lt.s32.totalorder %s19, 2
      // Predicated region
      $region17: #{tpu_custom_call.1} parent=5 // pred_check
        %p145 = pneg %p144
      $region18: #{tpu_custom_call.1} parent=5 // pred_check_branch
        %147 = sbr.rel (%p145) target = $region20
      $region19: #{tpu_custom_call.1} parent=5 // pred_region
        // Predicated region
        $region21: #{tpu_custom_call.1} parent=19 // pred_check
          %p148 = pneg %p60
        $region22: #{tpu_custom_call.1} parent=19 // pred_check_branch
          %150 = sbr.rel (%p148) target = $region24
        $region23: #{tpu_custom_call.1} parent=19 // pred_region
          %s151 = sand.u32 %s50, 1
          %s152 = scalar_lea.sflag [#allocation4], %s151
          %s153 = sand.u32 %s50, 1
          %s154 = smul.addr %s153, 64
          %s155 = scalar_lea.vmem [#allocation7], %s154
          %s157 = ssub.s32 1024, 1024
          %158 = vsyncadd %s152, %s157
          %s159 = smul.addr %s19, 8
          %s160 = smul.addr %s159, 128
          %s161 = scalar_lea.hbm %s1, %s160
          %s162 = sshll.u32 %s155, 4
          %s163 = int_to_ptr.vmem [resolvable:$true] %s162
          %168 = dma.hbm_to_vmem [thread:$0]  %s161, 1024, %s163, %s152, 128, 128, 8
        $region24: #{tpu_custom_call.1} parent=19 // pred_fallthru
          _
        // Predicated region
        $region25: #{tpu_custom_call.1} parent=19 // pred_check
          %p169 = pneg %p86
        $region26: #{tpu_custom_call.1} parent=19 // pred_check_branch
          %171 = sbr.rel (%p169) target = $region28
        $region27: #{tpu_custom_call.1} parent=19 // pred_region
          %s172 = sand.u32 %s76, 1
          %s173 = scalar_lea.sflag [#allocation9], %s172
          %s174 = sand.u32 %s76, 1
          %s175 = smul.addr %s174, 64
          %s176 = scalar_lea.vmem [#allocation8], %s175
          %s178 = ssub.s32 1024, 1024
          %179 = vsyncadd %s173, %s178
          %s180 = smul.addr %s19, 8
          %s181 = smul.addr %s180, 128
          %s182 = scalar_lea.hbm %s2, %s181
          %s183 = sshll.u32 %s176, 4
          %s184 = int_to_ptr.vmem [resolvable:$true] %s183
          %189 = dma.hbm_to_vmem [thread:$0]  %s182, 1024, %s184, %s173, 128, 128, 8
        $region28: #{tpu_custom_call.1} parent=19 // pred_fallthru
          _
      $region20: #{tpu_custom_call.1} parent=5 // pred_fallthru
        _
      %p190 = scmp.le.s32.totalorder 1, %s19
      %p191 = scmp.lt.s32.totalorder %s19, 3
      %p192 = pnand %p190, %p191
      %p193 = pneg %p192
      // Predicated region
      $region29: #{tpu_custom_call.1} parent=5 // pred_check
        _
      $region30: #{tpu_custom_call.1} parent=5 // pred_check_branch
        %195 = sbr.rel (%p192) target = $region32
      $region31: #{tpu_custom_call.1} parent=5 // pred_region
        %s196 = ssub.s32 %s19, 1
        // Predicated region
        $region33: #{tpu_custom_call.1} parent=31 // pred_check
          %p197 = pneg %p40
        $region34: #{tpu_custom_call.1} parent=31 // pred_check_branch
          %199 = sbr.rel (%p197) target = $region36
        $region35: #{tpu_custom_call.1} parent=31 // pred_region
          %200 = dma.done [#allocation6], 256
        $region36: #{tpu_custom_call.1} parent=31 // pred_fallthru
          _
        %s201 = sand.u32 %s53, 1
        %s202 = scalar_lea.sflag [#allocation4], %s201
        %s203 = sand.u32 %s53, 1
        %s204 = smul.addr %s203, 64
        %s205 = scalar_lea.vmem [#allocation7], %s204
        // Predicated region
        $region37: #{tpu_custom_call.1} parent=31 // pred_check
          %p206 = pneg %p66
        $region38: #{tpu_custom_call.1} parent=31 // pred_check_branch
          %208 = sbr.rel (%p206) target = $region40
        $region39: #{tpu_custom_call.1} parent=31 // pred_region
          %209 = dma.done %s202, 1024
        $region40: #{tpu_custom_call.1} parent=31 // pred_fallthru
          _
        %s210 = sand.u32 %s79, 1
        %s211 = scalar_lea.sflag [#allocation9], %s210
        %s212 = sand.u32 %s79, 1
        %s213 = smul.addr %s212, 64
        %s214 = scalar_lea.vmem [#allocation8], %s213
        // Predicated region
        $region41: #{tpu_custom_call.1} parent=31 // pred_check
          %p215 = pneg %p92
        $region42: #{tpu_custom_call.1} parent=31 // pred_check_branch
          %217 = sbr.rel (%p215) target = $region44
        $region43: #{tpu_custom_call.1} parent=31 // pred_region
          %218 = dma.done %s211, 1024
        $region44: #{tpu_custom_call.1} parent=31 // pred_fallthru
          _
        %219 = sfence
        %p220 = pneg %p40
        %p221 = pneg %p37
        %s222 = sand.u32 %s53, 1
        %s223 = scalar_lea.sflag [#allocation4], %s222
        %s224 = sand.u32 %s53, 1
        %s225 = smul.addr %s224, 64
        %s226 = scalar_lea.vmem [#allocation7], %s225
        %p227 = pneg %p66
        %p228 = pneg %p63
        %s229 = sand.u32 %s79, 1
        %s230 = scalar_lea.sflag [#allocation9], %s229
        %s231 = sand.u32 %s79, 1
        %s232 = smul.addr %s231, 64
        %s233 = scalar_lea.vmem [#allocation8], %s232
        %p234 = pneg %p92
        %p235 = pneg %p89
        %p236 = pneg %p118
        %p237 = pneg %p115
        %s238 = sand.u32 %s105, 1
        %s239 = scalar_lea.sflag [#allocation5], %s238
        %s240 = sand.u32 %s105, 1
        %s241 = smul.addr %s240, 64
        %s242 = scalar_lea.vmem [#allocation10], %s241
        %vm243 = vcmask 146432
        %244 = vst.msk [vmem:[#allocation2] sm:$0xff] %vm243, 0.0
        %245 = vst.msk [vmem:[#allocation2 + $0x8] sm:$0xff] %vm243, 0.0
        %vm246 = vcmask 140288
        %247 = vst.msk [vmem:[#allocation2 + $0x10] sm:$0x3] %vm246, 0.0
        %v248 = vld [vmem:[%s205] sm:$0xff]
        %v249 = vld [vmem:[%s205 + $0x8] sm:$0xff]
        %252 = vrot.lane.b32.xlu0 %v248, 1
        %v253 = vpop.permute.xlu0 %252
        %254 = vrot.lane.b32.xlu0 %v249, 1
        %v255 = vpop.permute.xlu0 %254
        %vm258 = vcmask 138248
        %259 = vst.msk [vmem:[#allocation2 + $0x1] sm:$0xff] %vm258, %v253
        %260 = vst.msk [vmem:[#allocation2 + $0x9] sm:$0xff] %vm258, %v255
        %v261 = vld [vmem:[#allocation2] sm:$0xff]
        %v262 = vld [vmem:[#allocation2 + $0x8] sm:$0xff]
        %v263 = vld [vmem:[#allocation2 + $0x10] sm:$0x3]
        %s264 = sld [smem:[#allocation3]]
        %v265 = vstv %s264
        %v266 = vmul.f32 %v261, %v265
        %v267 = vmul.f32 %v262, %v265
        %v268 = vadd.f32 %v266, 0.0
        %v269 = vadd.f32 %v267, 0.0
        %s270 = sld [smem:[#allocation3 + $0x1]]
        %v271 = vstv %s270
        %v272 = vmul.f32 %v261, %v271
        %v273 = vmul.f32 %v262, %v271
        %276 = vrot.lane.b32.xlu0 %v272, 127
        %v277 = vpop.permute.xlu0 %276
        %278 = vrot.lane.b32.xlu0 %v273, 127
        %v279 = vpop.permute.xlu0 %278
        %v282 = vadd.f32 %v268, %v277
        %v283 = vadd.f32 %v269, %v279
        %s284 = sld [smem:[#allocation3 + $0x2]]
        %v285 = vstv %s284
        %v286 = vmul.f32 %v261, %v285
        %v287 = vmul.f32 %v262, %v285
        %290 = vrot.lane.b32.xlu0 %v286, 126
        %v291 = vpop.permute.xlu0 %290
        %292 = vrot.lane.b32.xlu0 %v287, 126
        %v293 = vpop.permute.xlu0 %292
        %v296 = vadd.f32 %v282, %v291
        %v297 = vadd.f32 %v283, %v293
        %s298 = sld [smem:[#allocation3 + $0x3]]
        %v299 = vstv %s298
        %v300 = vmul.f32 %v261, %v299
        %v301 = vmul.f32 %v262, %v299
        %v302 = vmul.f32 %v263, %v299
        %vm306 = vcmask 1046528
        %v307 = vrot.slane %v300, 1
        %v308 = vrot.slane %v301, 1
        %v309 = vsel %vm306, %v307, %v308
        %v310 = vrot.slane %v302, 1
        %v311 = vsel %vm306, %v308, %v310
        %v314 = vadd.f32 %v296, %v309
        %v315 = vadd.f32 %v297, %v311
        %s316 = sld [smem:[#allocation3 + $0x4]]
        %v317 = vstv %s316
        %v318 = vmul.f32 %v261, %v317
        %v319 = vmul.f32 %v262, %v317
        %v320 = vmul.f32 %v263, %v317
        %v324 = vrot.slane %v318, 1
        %v325 = vrot.slane %v319, 1
        %v326 = vsel %vm306, %v324, %v325
        %v327 = vrot.slane %v320, 1
        %v328 = vsel %vm306, %v325, %v327
        %329 = vrot.lane.b32.xlu0 %v326, 127
        %v330 = vpop.permute.xlu0 %329
        %331 = vrot.lane.b32.xlu0 %v328, 127
        %v332 = vpop.permute.xlu0 %331
        %v335 = vadd.f32 %v314, %v330
        %v336 = vadd.f32 %v315, %v332
        %s337 = sld [smem:[#allocation3 + $0x5]]
        %v338 = vstv %s337
        %v339 = vmul.f32 %v261, %v338
        %v340 = vmul.f32 %v262, %v338
        %v341 = vmul.f32 %v263, %v338
        %v345 = vrot.slane %v339, 1
        %v346 = vrot.slane %v340, 1
        %v347 = vsel %vm306, %v345, %v346
        %v348 = vrot.slane %v341, 1
        %v349 = vsel %vm306, %v346, %v348
        %350 = vrot.lane.b32.xlu0 %v347, 126
        %v351 = vpop.permute.xlu0 %350
        %352 = vrot.lane.b32.xlu0 %v349, 126
        %v353 = vpop.permute.xlu0 %352
        %v356 = vadd.f32 %v335, %v351
        %v357 = vadd.f32 %v336, %v353
        %s358 = sld [smem:[#allocation3 + $0x6]]
        %v359 = vstv %s358
        %v360 = vmul.f32 %v261, %v359
        %v361 = vmul.f32 %v262, %v359
        %v362 = vmul.f32 %v263, %v359
        %vm366 = vcmask 1045504
        %v367 = vrot.slane %v360, 2
        %v368 = vrot.slane %v361, 2
        %v369 = vsel %vm366, %v367, %v368
        %v370 = vrot.slane %v362, 2
        %v371 = vsel %vm366, %v368, %v370
        %v374 = vadd.f32 %v356, %v369
        %v375 = vadd.f32 %v357, %v371
        %s376 = sld [smem:[#allocation3 + $0x7]]
        %v377 = vstv %s376
        %v378 = vmul.f32 %v261, %v377
        %v379 = vmul.f32 %v262, %v377
        %v380 = vmul.f32 %v263, %v377
        %v384 = vrot.slane %v378, 2
        %v385 = vrot.slane %v379, 2
        %v386 = vsel %vm366, %v384, %v385
        %v387 = vrot.slane %v380, 2
        %v388 = vsel %vm366, %v385, %v387
        %389 = vrot.lane.b32.xlu0 %v386, 127
        %v390 = vpop.permute.xlu0 %389
        %391 = vrot.lane.b32.xlu0 %v388, 127
        %v392 = vpop.permute.xlu0 %391
        %v395 = vadd.f32 %v374, %v390
        %v396 = vadd.f32 %v375, %v392
        %s397 = sld [smem:[#allocation3 + $0x8]]
        %v398 = vstv %s397
        %v399 = vmul.f32 %v261, %v398
        %v400 = vmul.f32 %v262, %v398
        %v401 = vmul.f32 %v263, %v398
        %v405 = vrot.slane %v399, 2
        %v406 = vrot.slane %v400, 2
        %v407 = vsel %vm366, %v405, %v406
        %v408 = vrot.slane %v401, 2
        %v409 = vsel %vm366, %v406, %v408
        %410 = vrot.lane.b32.xlu0 %v407, 126
        %v411 = vpop.permute.xlu0 %410
        %412 = vrot.lane.b32.xlu0 %v409, 126
        %v413 = vpop.permute.xlu0 %412
        %v416 = vadd.f32 %v395, %v411
        %v417 = vadd.f32 %v396, %v413
        %s418 = sld [smem:[#allocation3 + $0x9]]
        %v419 = vstv %s418
        %v420 = vadd.f32 %v416, %v419
        %v421 = vadd.f32 %v417, %v419
        %v422 = vmax.f32 %v420, 0.0
        %v423 = vmax.f32 %v421, 0.0
        %s424 = scalar_lea.vmem %s205, 16 [#allocation7]
        %v425 = vld [vmem:[%s424] sm:$0xff]
        %v426 = vld [vmem:[%s424 + $0x8] sm:$0xff]
        %429 = vrot.lane.b32.xlu0 %v425, 1
        %v430 = vpop.permute.xlu0 %429
        %431 = vrot.lane.b32.xlu0 %v426, 1
        %v432 = vpop.permute.xlu0 %431
        %435 = vst.msk [vmem:[#allocation2 + $0x1] sm:$0xff] %vm258, %v430
        %436 = vst.msk [vmem:[#allocation2 + $0x9] sm:$0xff] %vm258, %v432
        %v437 = vld [vmem:[#allocation2] sm:$0xff]
        %v438 = vld [vmem:[#allocation2 + $0x8] sm:$0xff]
        %v439 = vld [vmem:[#allocation2 + $0x10] sm:$0x3]
        %s440 = sld [smem:[#allocation3 + $0x80]]
        %v441 = vstv %s440
        %v442 = vmul.f32 %v437, %v441
        %v443 = vmul.f32 %v438, %v441
        %v444 = vadd.f32 %v442, 0.0
        %v445 = vadd.f32 %v443, 0.0
        %s446 = sld [smem:[#allocation3 + $0x81]]
        %v447 = vstv %s446
        %v448 = vmul.f32 %v437, %v447
        %v449 = vmul.f32 %v438, %v447
        %452 = vrot.lane.b32.xlu0 %v448, 127
        %v453 = vpop.permute.xlu0 %452
        %454 = vrot.lane.b32.xlu0 %v449, 127
        %v455 = vpop.permute.xlu0 %454
        %v458 = vadd.f32 %v444, %v453
        %v459 = vadd.f32 %v445, %v455
        %s460 = sld [smem:[#allocation3 + $0x82]]
        %v461 = vstv %s460
        %v462 = vmul.f32 %v437, %v461
        %v463 = vmul.f32 %v438, %v461
        %466 = vrot.lane.b32.xlu0 %v462, 126
        %v467 = vpop.permute.xlu0 %466
        %468 = vrot.lane.b32.xlu0 %v463, 126
        %v469 = vpop.permute.xlu0 %468
        %v472 = vadd.f32 %v458, %v467
        %v473 = vadd.f32 %v459, %v469
        %s474 = sld [smem:[#allocation3 + $0x83]]
        %v475 = vstv %s474
        %v476 = vmul.f32 %v437, %v475
        %v477 = vmul.f32 %v438, %v475
        %v478 = vmul.f32 %v439, %v475
        %v482 = vrot.slane %v476, 1
        %v483 = vrot.slane %v477, 1
        %v484 = vsel %vm306, %v482, %v483
        %v485 = vrot.slane %v478, 1
        %v486 = vsel %vm306, %v483, %v485
        %v489 = vadd.f32 %v472, %v484
        %v490 = vadd.f32 %v473, %v486
        %s491 = sld [smem:[#allocation3 + $0x84]]
        %v492 = vstv %s491
        %v493 = vmul.f32 %v437, %v492
        %v494 = vmul.f32 %v438, %v492
        %v495 = vmul.f32 %v439, %v492
        %v499 = vrot.slane %v493, 1
        %v500 = vrot.slane %v494, 1
        %v501 = vsel %vm306, %v499, %v500
        %v502 = vrot.slane %v495, 1
        %v503 = vsel %vm306, %v500, %v502
        %504 = vrot.lane.b32.xlu0 %v501, 127
        %v505 = vpop.permute.xlu0 %504
        %506 = vrot.lane.b32.xlu0 %v503, 127
        %v507 = vpop.permute.xlu0 %506
        %v510 = vadd.f32 %v489, %v505
        %v511 = vadd.f32 %v490, %v507
        %s512 = sld [smem:[#allocation3 + $0x85]]
        %v513 = vstv %s512
        %v514 = vmul.f32 %v437, %v513
        %v515 = vmul.f32 %v438, %v513
        %v516 = vmul.f32 %v439, %v513
        %v520 = vrot.slane %v514, 1
        %v521 = vrot.slane %v515, 1
        %v522 = vsel %vm306, %v520, %v521
        %v523 = vrot.slane %v516, 1
        %v524 = vsel %vm306, %v521, %v523
        %525 = vrot.lane.b32.xlu0 %v522, 126
        %v526 = vpop.permute.xlu0 %525
        %527 = vrot.lane.b32.xlu0 %v524, 126
        %v528 = vpop.permute.xlu0 %527
        %v531 = vadd.f32 %v510, %v526
        %v532 = vadd.f32 %v511, %v528
        %s533 = sld [smem:[#allocation3 + $0x86]]
        %v534 = vstv %s533
        %v535 = vmul.f32 %v437, %v534
        %v536 = vmul.f32 %v438, %v534
        %v537 = vmul.f32 %v439, %v534
        %v541 = vrot.slane %v535, 2
        %v542 = vrot.slane %v536, 2
        %v543 = vsel %vm366, %v541, %v542
        %v544 = vrot.slane %v537, 2
        %v545 = vsel %vm366, %v542, %v544
        %v548 = vadd.f32 %v531, %v543
        %v549 = vadd.f32 %v532, %v545
        %s550 = sld [smem:[#allocation3 + $0x87]]
        %v551 = vstv %s550
        %v552 = vmul.f32 %v437, %v551
        %v553 = vmul.f32 %v438, %v551
        %v554 = vmul.f32 %v439, %v551
        %v558 = vrot.slane %v552, 2
        %v559 = vrot.slane %v553, 2
        %v560 = vsel %vm366, %v558, %v559
        %v561 = vrot.slane %v554, 2
        %v562 = vsel %vm366, %v559, %v561
        %563 = vrot.lane.b32.xlu0 %v560, 127
        %v564 = vpop.permute.xlu0 %563
        %565 = vrot.lane.b32.xlu0 %v562, 127
        %v566 = vpop.permute.xlu0 %565
        %v569 = vadd.f32 %v548, %v564
        %v570 = vadd.f32 %v549, %v566
        %s571 = sld [smem:[#allocation3 + $0x88]]
        %v572 = vstv %s571
        %v573 = vmul.f32 %v437, %v572
        %v574 = vmul.f32 %v438, %v572
        %v575 = vmul.f32 %v439, %v572
        %v579 = vrot.slane %v573, 2
        %v580 = vrot.slane %v574, 2
        %v581 = vsel %vm366, %v579, %v580
        %v582 = vrot.slane %v575, 2
        %v583 = vsel %vm366, %v580, %v582
        %584 = vrot.lane.b32.xlu0 %v581, 126
        %v585 = vpop.permute.xlu0 %584
        %586 = vrot.lane.b32.xlu0 %v583, 126
        %v587 = vpop.permute.xlu0 %586
        %v590 = vadd.f32 %v569, %v585
        %v591 = vadd.f32 %v570, %v587
        %s592 = sld [smem:[#allocation3 + $0x89]]
        %v593 = vstv %s592
        %v594 = vadd.f32 %v590, %v593
        %v595 = vadd.f32 %v591, %v593
        %v596 = vmax.f32 %v594, 0.0
        %v597 = vmax.f32 %v595, 0.0
        %s598 = scalar_lea.vmem %s205, 32 [#allocation7]
        %v599 = vld [vmem:[%s598] sm:$0xff]
        %v600 = vld [vmem:[%s598 + $0x8] sm:$0xff]
        %603 = vrot.lane.b32.xlu0 %v599, 1
        %v604 = vpop.permute.xlu0 %603
        %605 = vrot.lane.b32.xlu0 %v600, 1
        %v606 = vpop.permute.xlu0 %605
        %609 = vst.msk [vmem:[#allocation2 + $0x1] sm:$0xff] %vm258, %v604
        %610 = vst.msk [vmem:[#allocation2 + $0x9] sm:$0xff] %vm258, %v606
        %v611 = vld [vmem:[#allocation2] sm:$0xff]
        %v612 = vld [vmem:[#allocation2 + $0x8] sm:$0xff]
        %v613 = vld [vmem:[#allocation2 + $0x10] sm:$0x3]
        %s614 = sld [smem:[#allocation3 + $0x100]]
        %v615 = vstv %s614
        %v616 = vmul.f32 %v611, %v615
        %v617 = vmul.f32 %v612, %v615
        %v618 = vadd.f32 %v616, 0.0
        %v619 = vadd.f32 %v617, 0.0
        %s620 = sld [smem:[#allocation3 + $0x101]]
        %v621 = vstv %s620
        %v622 = vmul.f32 %v611, %v621
        %v623 = vmul.f32 %v612, %v621
        %626 = vrot.lane.b32.xlu0 %v622, 127
        %v627 = vpop.permute.xlu0 %626
        %628 = vrot.lane.b32.xlu0 %v623, 127
        %v629 = vpop.permute.xlu0 %628
        %v632 = vadd.f32 %v618, %v627
        %v633 = vadd.f32 %v619, %v629
        %s634 = sld [smem:[#allocation3 + $0x102]]
        %v635 = vstv %s634
        %v636 = vmul.f32 %v611, %v635
        %v637 = vmul.f32 %v612, %v635
        %640 = vrot.lane.b32.xlu0 %v636, 126
        %v641 = vpop.permute.xlu0 %640
        %642 = vrot.lane.b32.xlu0 %v637, 126
        %v643 = vpop.permute.xlu0 %642
        %v646 = vadd.f32 %v632, %v641
        %v647 = vadd.f32 %v633, %v643
        %s648 = sld [smem:[#allocation3 + $0x103]]
        %v649 = vstv %s648
        %v650 = vmul.f32 %v611, %v649
        %v651 = vmul.f32 %v612, %v649
        %v652 = vmul.f32 %v613, %v649
        %v656 = vrot.slane %v650, 1
        %v657 = vrot.slane %v651, 1
        %v658 = vsel %vm306, %v656, %v657
        %v659 = vrot.slane %v652, 1
        %v660 = vsel %vm306, %v657, %v659
        %v663 = vadd.f32 %v646, %v658
        %v664 = vadd.f32 %v647, %v660
        %s665 = sld [smem:[#allocation3 + $0x104]]
        %v666 = vstv %s665
        %v667 = vmul.f32 %v611, %v666
        %v668 = vmul.f32 %v612, %v666
        %v669 = vmul.f32 %v613, %v666
        %v673 = vrot.slane %v667, 1
        %v674 = vrot.slane %v668, 1
        %v675 = vsel %vm306, %v673, %v674
        %v676 = vrot.slane %v669, 1
        %v677 = vsel %vm306, %v674, %v676
        %678 = vrot.lane.b32.xlu0 %v675, 127
        %v679 = vpop.permute.xlu0 %678
        %680 = vrot.lane.b32.xlu0 %v677, 127
        %v681 = vpop.permute.xlu0 %680
        %v684 = vadd.f32 %v663, %v679
        %v685 = vadd.f32 %v664, %v681
        %s686 = sld [smem:[#allocation3 + $0x105]]
        %v687 = vstv %s686
        %v688 = vmul.f32 %v611, %v687
        %v689 = vmul.f32 %v612, %v687
        %v690 = vmul.f32 %v613, %v687
        %v694 = vrot.slane %v688, 1
        %v695 = vrot.slane %v689, 1
        %v696 = vsel %vm306, %v694, %v695
        %v697 = vrot.slane %v690, 1
        %v698 = vsel %vm306, %v695, %v697
        %699 = vrot.lane.b32.xlu0 %v696, 126
        %v700 = vpop.permute.xlu0 %699
        %701 = vrot.lane.b32.xlu0 %v698, 126
        %v702 = vpop.permute.xlu0 %701
        %v705 = vadd.f32 %v684, %v700
        %v706 = vadd.f32 %v685, %v702
        %s707 = sld [smem:[#allocation3 + $0x106]]
        %v708 = vstv %s707
        %v709 = vmul.f32 %v611, %v708
        %v710 = vmul.f32 %v612, %v708
        %v711 = vmul.f32 %v613, %v708
        %v715 = vrot.slane %v709, 2
        %v716 = vrot.slane %v710, 2
        %v717 = vsel %vm366, %v715, %v716
        %v718 = vrot.slane %v711, 2
        %v719 = vsel %vm366, %v716, %v718
        %v722 = vadd.f32 %v705, %v717
        %v723 = vadd.f32 %v706, %v719
        %s724 = sld [smem:[#allocation3 + $0x107]]
        %v725 = vstv %s724
        %v726 = vmul.f32 %v611, %v725
        %v727 = vmul.f32 %v612, %v725
        %v728 = vmul.f32 %v613, %v725
        %v732 = vrot.slane %v726, 2
        %v733 = vrot.slane %v727, 2
        %v734 = vsel %vm366, %v732, %v733
        %v735 = vrot.slane %v728, 2
        %v736 = vsel %vm366, %v733, %v735
        %737 = vrot.lane.b32.xlu0 %v734, 127
        %v738 = vpop.permute.xlu0 %737
        %739 = vrot.lane.b32.xlu0 %v736, 127
        %v740 = vpop.permute.xlu0 %739
        %v743 = vadd.f32 %v722, %v738
        %v744 = vadd.f32 %v723, %v740
        %s745 = sld [smem:[#allocation3 + $0x108]]
        %v746 = vstv %s745
        %v747 = vmul.f32 %v611, %v746
        %v748 = vmul.f32 %v612, %v746
        %v749 = vmul.f32 %v613, %v746
        %v753 = vrot.slane %v747, 2
        %v754 = vrot.slane %v748, 2
        %v755 = vsel %vm366, %v753, %v754
        %v756 = vrot.slane %v749, 2
        %v757 = vsel %vm366, %v754, %v756
        %758 = vrot.lane.b32.xlu0 %v755, 126
        %v759 = vpop.permute.xlu0 %758
        %760 = vrot.lane.b32.xlu0 %v757, 126
        %v761 = vpop.permute.xlu0 %760
        %v764 = vadd.f32 %v743, %v759
        %v765 = vadd.f32 %v744, %v761
        %s766 = sld [smem:[#allocation3 + $0x109]]
        %v767 = vstv %s766
        %v768 = vadd.f32 %v764, %v767
        %v769 = vadd.f32 %v765, %v767
        %v770 = vmax.f32 %v768, 0.0
        %v771 = vmax.f32 %v769, 0.0
        %s772 = scalar_lea.vmem %s205, 48 [#allocation7]
        %v773 = vld [vmem:[%s772] sm:$0xff]
        %v774 = vld [vmem:[%s772 + $0x8] sm:$0xff]
        %777 = vrot.lane.b32.xlu0 %v773, 1
        %v778 = vpop.permute.xlu0 %777
        %779 = vrot.lane.b32.xlu0 %v774, 1
        %v780 = vpop.permute.xlu0 %779
        %783 = vst.msk [vmem:[#allocation2 + $0x1] sm:$0xff] %vm258, %v778
        %784 = vst.msk [vmem:[#allocation2 + $0x9] sm:$0xff] %vm258, %v780
        %v785 = vld [vmem:[#allocation2] sm:$0xff]
        %v786 = vld [vmem:[#allocation2 + $0x8] sm:$0xff]
        %v787 = vld [vmem:[#allocation2 + $0x10] sm:$0x3]
        %s788 = sld [smem:[#allocation3 + $0x180]]
        %v789 = vstv %s788
        %v790 = vmul.f32 %v785, %v789
        %v791 = vmul.f32 %v786, %v789
        %v792 = vadd.f32 %v790, 0.0
        %v793 = vadd.f32 %v791, 0.0
        %s794 = sld [smem:[#allocation3 + $0x181]]
        %v795 = vstv %s794
        %v796 = vmul.f32 %v785, %v795
        %v797 = vmul.f32 %v786, %v795
        %800 = vrot.lane.b32.xlu0 %v796, 127
        %v801 = vpop.permute.xlu0 %800
        %802 = vrot.lane.b32.xlu0 %v797, 127
        %v803 = vpop.permute.xlu0 %802
        %v806 = vadd.f32 %v792, %v801
        %v807 = vadd.f32 %v793, %v803
        %s808 = sld [smem:[#allocation3 + $0x182]]
        %v809 = vstv %s808
        %v810 = vmul.f32 %v785, %v809
        %v811 = vmul.f32 %v786, %v809
        %814 = vrot.lane.b32.xlu0 %v810, 126
        %v815 = vpop.permute.xlu0 %814
        %816 = vrot.lane.b32.xlu0 %v811, 126
        %v817 = vpop.permute.xlu0 %816
        %v820 = vadd.f32 %v806, %v815
        %v821 = vadd.f32 %v807, %v817
        %s822 = sld [smem:[#allocation3 + $0x183]]
        %v823 = vstv %s822
        %v824 = vmul.f32 %v785, %v823
        %v825 = vmul.f32 %v786, %v823
        %v826 = vmul.f32 %v787, %v823
        %v830 = vrot.slane %v824, 1
        %v831 = vrot.slane %v825, 1
        %v832 = vsel %vm306, %v830, %v831
        %v833 = vrot.slane %v826, 1
        %v834 = vsel %vm306, %v831, %v833
        %v837 = vadd.f32 %v820, %v832
        %v838 = vadd.f32 %v821, %v834
        %s839 = sld [smem:[#allocation3 + $0x184]]
        %v840 = vstv %s839
        %v841 = vmul.f32 %v785, %v840
        %v842 = vmul.f32 %v786, %v840
        %v843 = vmul.f32 %v787, %v840
        %v847 = vrot.slane %v841, 1
        %v848 = vrot.slane %v842, 1
        %v849 = vsel %vm306, %v847, %v848
        %v850 = vrot.slane %v843, 1
        %v851 = vsel %vm306, %v848, %v850
        %852 = vrot.lane.b32.xlu0 %v849, 127
        %v853 = vpop.permute.xlu0 %852
        %854 = vrot.lane.b32.xlu0 %v851, 127
        %v855 = vpop.permute.xlu0 %854
        %v858 = vadd.f32 %v837, %v853
        %v859 = vadd.f32 %v838, %v855
        %s860 = sld [smem:[#allocation3 + $0x185]]
        %v861 = vstv %s860
        %v862 = vmul.f32 %v785, %v861
        %v863 = vmul.f32 %v786, %v861
        %v864 = vmul.f32 %v787, %v861
        %v868 = vrot.slane %v862, 1
        %v869 = vrot.slane %v863, 1
        %v870 = vsel %vm306, %v868, %v869
        %v871 = vrot.slane %v864, 1
        %v872 = vsel %vm306, %v869, %v871
        %873 = vrot.lane.b32.xlu0 %v870, 126
        %v874 = vpop.permute.xlu0 %873
        %875 = vrot.lane.b32.xlu0 %v872, 126
        %v876 = vpop.permute.xlu0 %875
        %v879 = vadd.f32 %v858, %v874
        %v880 = vadd.f32 %v859, %v876
        %s881 = sld [smem:[#allocation3 + $0x186]]
        %v882 = vstv %s881
        %v883 = vmul.f32 %v785, %v882
        %v884 = vmul.f32 %v786, %v882
        %v885 = vmul.f32 %v787, %v882
        %v889 = vrot.slane %v883, 2
        %v890 = vrot.slane %v884, 2
        %v891 = vsel %vm366, %v889, %v890
        %v892 = vrot.slane %v885, 2
        %v893 = vsel %vm366, %v890, %v892
        %v896 = vadd.f32 %v879, %v891
        %v897 = vadd.f32 %v880, %v893
        %s898 = sld [smem:[#allocation3 + $0x187]]
        %v899 = vstv %s898
        %v900 = vmul.f32 %v785, %v899
        %v901 = vmul.f32 %v786, %v899
        %v902 = vmul.f32 %v787, %v899
        %v906 = vrot.slane %v900, 2
        %v907 = vrot.slane %v901, 2
        %v908 = vsel %vm366, %v906, %v907
        %v909 = vrot.slane %v902, 2
        %v910 = vsel %vm366, %v907, %v909
        %911 = vrot.lane.b32.xlu0 %v908, 127
        %v912 = vpop.permute.xlu0 %911
        %913 = vrot.lane.b32.xlu0 %v910, 127
        %v914 = vpop.permute.xlu0 %913
        %v917 = vadd.f32 %v896, %v912
        %v918 = vadd.f32 %v897, %v914
        %s919 = sld [smem:[#allocation3 + $0x188]]
        %v920 = vstv %s919
        %v921 = vmul.f32 %v785, %v920
        %v922 = vmul.f32 %v786, %v920
        %v923 = vmul.f32 %v787, %v920
        %v927 = vrot.slane %v921, 2
        %v928 = vrot.slane %v922, 2
        %v929 = vsel %vm366, %v927, %v928
        %v930 = vrot.slane %v923, 2
        %v931 = vsel %vm366, %v928, %v930
        %932 = vrot.lane.b32.xlu0 %v929, 126
        %v933 = vpop.permute.xlu0 %932
        %934 = vrot.lane.b32.xlu0 %v931, 126
        %v935 = vpop.permute.xlu0 %934
        %v938 = vadd.f32 %v917, %v933
        %v939 = vadd.f32 %v918, %v935
        %s940 = sld [smem:[#allocation3 + $0x189]]
        %v941 = vstv %s940
        %v942 = vadd.f32 %v938, %v941
        %v943 = vadd.f32 %v939, %v941
        %v944 = vmax.f32 %v942, 0.0
        %v945 = vmax.f32 %v943, 0.0
        %v946 = vld [vmem:[%s214] sm:$0xff]
        %v947 = vld [vmem:[%s214 + $0x8] sm:$0xff]
        %950 = vrot.lane.b32.xlu0 %v946, 1
        %v951 = vpop.permute.xlu0 %950
        %952 = vrot.lane.b32.xlu0 %v947, 1
        %v953 = vpop.permute.xlu0 %952
        %956 = vst.msk [vmem:[#allocation2 + $0x1] sm:$0xff] %vm258, %v951
        %957 = vst.msk [vmem:[#allocation2 + $0x9] sm:$0xff] %vm258, %v953
        %v958 = vld [vmem:[#allocation2] sm:$0xff]
        %v959 = vld [vmem:[#allocation2 + $0x8] sm:$0xff]
        %v960 = vld [vmem:[#allocation2 + $0x10] sm:$0x3]
        %s961 = sld [smem:[#allocation3 + $0x200]]
        %v962 = vstv %s961
        %v963 = vmul.f32 %v958, %v962
        %v964 = vmul.f32 %v959, %v962
        %v965 = vadd.f32 %v963, 0.0
        %v966 = vadd.f32 %v964, 0.0
        %s967 = sld [smem:[#allocation3 + $0x201]]
        %v968 = vstv %s967
        %v969 = vmul.f32 %v958, %v968
        %v970 = vmul.f32 %v959, %v968
        %973 = vrot.lane.b32.xlu0 %v969, 127
        %v974 = vpop.permute.xlu0 %973
        %975 = vrot.lane.b32.xlu0 %v970, 127
        %v976 = vpop.permute.xlu0 %975
        %v979 = vadd.f32 %v965, %v974
        %v980 = vadd.f32 %v966, %v976
        %s981 = sld [smem:[#allocation3 + $0x202]]
        %v982 = vstv %s981
        %v983 = vmul.f32 %v958, %v982
        %v984 = vmul.f32 %v959, %v982
        %987 = vrot.lane.b32.xlu0 %v983, 126
        %v988 = vpop.permute.xlu0 %987
        %989 = vrot.lane.b32.xlu0 %v984, 126
        %v990 = vpop.permute.xlu0 %989
        %v993 = vadd.f32 %v979, %v988
        %v994 = vadd.f32 %v980, %v990
        %s995 = sld [smem:[#allocation3 + $0x203]]
        %v996 = vstv %s995
        %v997 = vmul.f32 %v958, %v996
        %v998 = vmul.f32 %v959, %v996
        %v999 = vmul.f32 %v960, %v996
        %v1003 = vrot.slane %v997, 1
        %v1004 = vrot.slane %v998, 1
        %v1005 = vsel %vm306, %v1003, %v1004
        %v1006 = vrot.slane %v999, 1
        %v1007 = vsel %vm306, %v1004, %v1006
        %v1010 = vadd.f32 %v993, %v1005
        %v1011 = vadd.f32 %v994, %v1007
        %s1012 = sld [smem:[#allocation3 + $0x204]]
        %v1013 = vstv %s1012
        %v1014 = vmul.f32 %v958, %v1013
        %v1015 = vmul.f32 %v959, %v1013
        %v1016 = vmul.f32 %v960, %v1013
        %v1020 = vrot.slane %v1014, 1
        %v1021 = vrot.slane %v1015, 1
        %v1022 = vsel %vm306, %v1020, %v1021
        %v1023 = vrot.slane %v1016, 1
        %v1024 = vsel %vm306, %v1021, %v1023
        %1025 = vrot.lane.b32.xlu0 %v1022, 127
        %v1026 = vpop.permute.xlu0 %1025
        %1027 = vrot.lane.b32.xlu0 %v1024, 127
        %v1028 = vpop.permute.xlu0 %1027
        %v1031 = vadd.f32 %v1010, %v1026
        %v1032 = vadd.f32 %v1011, %v1028
        %s1033 = sld [smem:[#allocation3 + $0x205]]
        %v1034 = vstv %s1033
        %v1035 = vmul.f32 %v958, %v1034
        %v1036 = vmul.f32 %v959, %v1034
        %v1037 = vmul.f32 %v960, %v1034
        %v1041 = vrot.slane %v1035, 1
        %v1042 = vrot.slane %v1036, 1
        %v1043 = vsel %vm306, %v1041, %v1042
        %v1044 = vrot.slane %v1037, 1
        %v1045 = vsel %vm306, %v1042, %v1044
        %1046 = vrot.lane.b32.xlu0 %v1043, 126
        %v1047 = vpop.permute.xlu0 %1046
        %1048 = vrot.lane.b32.xlu0 %v1045, 126
        %v1049 = vpop.permute.xlu0 %1048
        %v1052 = vadd.f32 %v1031, %v1047
        %v1053 = vadd.f32 %v1032, %v1049
        %s1054 = sld [smem:[#allocation3 + $0x206]]
        %v1055 = vstv %s1054
        %v1056 = vmul.f32 %v958, %v1055
        %v1057 = vmul.f32 %v959, %v1055
        %v1058 = vmul.f32 %v960, %v1055
        %v1062 = vrot.slane %v1056, 2
        %v1063 = vrot.slane %v1057, 2
        %v1064 = vsel %vm366, %v1062, %v1063
        %v1065 = vrot.slane %v1058, 2
        %v1066 = vsel %vm366, %v1063, %v1065
        %v1069 = vadd.f32 %v1052, %v1064
        %v1070 = vadd.f32 %v1053, %v1066
        %s1071 = sld [smem:[#allocation3 + $0x207]]
        %v1072 = vstv %s1071
        %v1073 = vmul.f32 %v958, %v1072
        %v1074 = vmul.f32 %v959, %v1072
        %v1075 = vmul.f32 %v960, %v1072
        %v1079 = vrot.slane %v1073, 2
        %v1080 = vrot.slane %v1074, 2
        %v1081 = vsel %vm366, %v1079, %v1080
        %v1082 = vrot.slane %v1075, 2
        %v1083 = vsel %vm366, %v1080, %v1082
        %1084 = vrot.lane.b32.xlu0 %v1081, 127
        %v1085 = vpop.permute.xlu0 %1084
        %1086 = vrot.lane.b32.xlu0 %v1083, 127
        %v1087 = vpop.permute.xlu0 %1086
        %v1090 = vadd.f32 %v1069, %v1085
        %v1091 = vadd.f32 %v1070, %v1087
        %s1092 = sld [smem:[#allocation3 + $0x208]]
        %v1093 = vstv %s1092
        %v1094 = vmul.f32 %v958, %v1093
        %v1095 = vmul.f32 %v959, %v1093
        %v1096 = vmul.f32 %v960, %v1093
        %v1100 = vrot.slane %v1094, 2
        %v1101 = vrot.slane %v1095, 2
        %v1102 = vsel %vm366, %v1100, %v1101
        %v1103 = vrot.slane %v1096, 2
        %v1104 = vsel %vm366, %v1101, %v1103
        %1105 = vrot.lane.b32.xlu0 %v1102, 126
        %v1106 = vpop.permute.xlu0 %1105
        %1107 = vrot.lane.b32.xlu0 %v1104, 126
        %v1108 = vpop.permute.xlu0 %1107
        %v1111 = vadd.f32 %v1090, %v1106
        %v1112 = vadd.f32 %v1091, %v1108
        %s1113 = sld [smem:[#allocation3 + $0x209]]
        %v1114 = vstv %s1113
        %v1115 = vadd.f32 %v1111, %v1114
        %v1116 = vadd.f32 %v1112, %v1114
        %v1117 = vmax.f32 %v1115, 0.0
        %v1118 = vmax.f32 %v1116, 0.0
        %s1119 = scalar_lea.vmem %s214, 16 [#allocation8]
        %v1120 = vld [vmem:[%s1119] sm:$0xff]
        %v1121 = vld [vmem:[%s1119 + $0x8] sm:$0xff]
        %1124 = vrot.lane.b32.xlu0 %v1120, 1
        %v1125 = vpop.permute.xlu0 %1124
        %1126 = vrot.lane.b32.xlu0 %v1121, 1
        %v1127 = vpop.permute.xlu0 %1126
        %1130 = vst.msk [vmem:[#allocation2 + $0x1] sm:$0xff] %vm258, %v1125
        %1131 = vst.msk [vmem:[#allocation2 + $0x9] sm:$0xff] %vm258, %v1127
        %v1132 = vld [vmem:[#allocation2] sm:$0xff]
        %v1133 = vld [vmem:[#allocation2 + $0x8] sm:$0xff]
        %v1134 = vld [vmem:[#allocation2 + $0x10] sm:$0x3]
        %s1135 = sld [smem:[#allocation3 + $0x280]]
        %v1136 = vstv %s1135
        %v1137 = vmul.f32 %v1132, %v1136
        %v1138 = vmul.f32 %v1133, %v1136
        %v1139 = vadd.f32 %v1137, 0.0
        %v1140 = vadd.f32 %v1138, 0.0
        %s1141 = sld [smem:[#allocation3 + $0x281]]
        %v1142 = vstv %s1141
        %v1143 = vmul.f32 %v1132, %v1142
        %v1144 = vmul.f32 %v1133, %v1142
        %1147 = vrot.lane.b32.xlu0 %v1143, 127
        %v1148 = vpop.permute.xlu0 %1147
        %1149 = vrot.lane.b32.xlu0 %v1144, 127
        %v1150 = vpop.permute.xlu0 %1149
        %v1153 = vadd.f32 %v1139, %v1148
        %v1154 = vadd.f32 %v1140, %v1150
        %s1155 = sld [smem:[#allocation3 + $0x282]]
        %v1156 = vstv %s1155
        %v1157 = vmul.f32 %v1132, %v1156
        %v1158 = vmul.f32 %v1133, %v1156
        %1161 = vrot.lane.b32.xlu0 %v1157, 126
        %v1162 = vpop.permute.xlu0 %1161
        %1163 = vrot.lane.b32.xlu0 %v1158, 126
        %v1164 = vpop.permute.xlu0 %1163
        %v1167 = vadd.f32 %v1153, %v1162
        %v1168 = vadd.f32 %v1154, %v1164
        %s1169 = sld [smem:[#allocation3 + $0x283]]
        %v1170 = vstv %s1169
        %v1171 = vmul.f32 %v1132, %v1170
        %v1172 = vmul.f32 %v1133, %v1170
        %v1173 = vmul.f32 %v1134, %v1170
        %v1177 = vrot.slane %v1171, 1
        %v1178 = vrot.slane %v1172, 1
        %v1179 = vsel %vm306, %v1177, %v1178
        %v1180 = vrot.slane %v1173, 1
        %v1181 = vsel %vm306, %v1178, %v1180
        %v1184 = vadd.f32 %v1167, %v1179
        %v1185 = vadd.f32 %v1168, %v1181
        %s1186 = sld [smem:[#allocation3 + $0x284]]
        %v1187 = vstv %s1186
        %v1188 = vmul.f32 %v1132, %v1187
        %v1189 = vmul.f32 %v1133, %v1187
        %v1190 = vmul.f32 %v1134, %v1187
        %v1194 = vrot.slane %v1188, 1
        %v1195 = vrot.slane %v1189, 1
        %v1196 = vsel %vm306, %v1194, %v1195
        %v1197 = vrot.slane %v1190, 1
        %v1198 = vsel %vm306, %v1195, %v1197
        %1199 = vrot.lane.b32.xlu0 %v1196, 127
        %v1200 = vpop.permute.xlu0 %1199
        %1201 = vrot.lane.b32.xlu0 %v1198, 127
        %v1202 = vpop.permute.xlu0 %1201
        %v1205 = vadd.f32 %v1184, %v1200
        %v1206 = vadd.f32 %v1185, %v1202
        %s1207 = sld [smem:[#allocation3 + $0x285]]
        %v1208 = vstv %s1207
        %v1209 = vmul.f32 %v1132, %v1208
        %v1210 = vmul.f32 %v1133, %v1208
        %v1211 = vmul.f32 %v1134, %v1208
        %v1215 = vrot.slane %v1209, 1
        %v1216 = vrot.slane %v1210, 1
        %v1217 = vsel %vm306, %v1215, %v1216
        %v1218 = vrot.slane %v1211, 1
        %v1219 = vsel %vm306, %v1216, %v1218
        %1220 = vrot.lane.b32.xlu0 %v1217, 126
        %v1221 = vpop.permute.xlu0 %1220
        %1222 = vrot.lane.b32.xlu0 %v1219, 126
        %v1223 = vpop.permute.xlu0 %1222
        %v1226 = vadd.f32 %v1205, %v1221
        %v1227 = vadd.f32 %v1206, %v1223
        %s1228 = sld [smem:[#allocation3 + $0x286]]
        %v1229 = vstv %s1228
        %v1230 = vmul.f32 %v1132, %v1229
        %v1231 = vmul.f32 %v1133, %v1229
        %v1232 = vmul.f32 %v1134, %v1229
        %v1236 = vrot.slane %v1230, 2
        %v1237 = vrot.slane %v1231, 2
        %v1238 = vsel %vm366, %v1236, %v1237
        %v1239 = vrot.slane %v1232, 2
        %v1240 = vsel %vm366, %v1237, %v1239
        %v1243 = vadd.f32 %v1226, %v1238
        %v1244 = vadd.f32 %v1227, %v1240
        %s1245 = sld [smem:[#allocation3 + $0x287]]
        %v1246 = vstv %s1245
        %v1247 = vmul.f32 %v1132, %v1246
        %v1248 = vmul.f32 %v1133, %v1246
        %v1249 = vmul.f32 %v1134, %v1246
        %v1253 = vrot.slane %v1247, 2
        %v1254 = vrot.slane %v1248, 2
        %v1255 = vsel %vm366, %v1253, %v1254
        %v1256 = vrot.slane %v1249, 2
        %v1257 = vsel %vm366, %v1254, %v1256
        %1258 = vrot.lane.b32.xlu0 %v1255, 127
        %v1259 = vpop.permute.xlu0 %1258
        %1260 = vrot.lane.b32.xlu0 %v1257, 127
        %v1261 = vpop.permute.xlu0 %1260
        %v1264 = vadd.f32 %v1243, %v1259
        %v1265 = vadd.f32 %v1244, %v1261
        %s1266 = sld [smem:[#allocation3 + $0x288]]
        %v1267 = vstv %s1266
        %v1268 = vmul.f32 %v1132, %v1267
        %v1269 = vmul.f32 %v1133, %v1267
        %v1270 = vmul.f32 %v1134, %v1267
        %v1274 = vrot.slane %v1268, 2
        %v1275 = vrot.slane %v1269, 2
        %v1276 = vsel %vm366, %v1274, %v1275
        %v1277 = vrot.slane %v1270, 2
        %v1278 = vsel %vm366, %v1275, %v1277
        %1279 = vrot.lane.b32.xlu0 %v1276, 126
        %v1280 = vpop.permute.xlu0 %1279
        %1281 = vrot.lane.b32.xlu0 %v1278, 126
        %v1282 = vpop.permute.xlu0 %1281
        %v1285 = vadd.f32 %v1264, %v1280
        %v1286 = vadd.f32 %v1265, %v1282
        %s1287 = sld [smem:[#allocation3 + $0x289]]
        %v1288 = vstv %s1287
        %v1289 = vadd.f32 %v1285, %v1288
        %v1290 = vadd.f32 %v1286, %v1288
        %v1291 = vmax.f32 %v1289, 0.0
        %v1292 = vmax.f32 %v1290, 0.0
        %s1293 = scalar_lea.vmem %s214, 32 [#allocation8]
        %v1294 = vld [vmem:[%s1293] sm:$0xff]
        %v1295 = vld [vmem:[%s1293 + $0x8] sm:$0xff]
        %1298 = vrot.lane.b32.xlu0 %v1294, 1
        %v1299 = vpop.permute.xlu0 %1298
        %1300 = vrot.lane.b32.xlu0 %v1295, 1
        %v1301 = vpop.permute.xlu0 %1300
        %1304 = vst.msk [vmem:[#allocation2 + $0x1] sm:$0xff] %vm258, %v1299
        %1305 = vst.msk [vmem:[#allocation2 + $0x9] sm:$0xff] %vm258, %v1301
        %v1306 = vld [vmem:[#allocation2] sm:$0xff]
        %v1307 = vld [vmem:[#allocation2 + $0x8] sm:$0xff]
        %v1308 = vld [vmem:[#allocation2 + $0x10] sm:$0x3]
        %s1309 = sld [smem:[#allocation3 + $0x300]]
        %v1310 = vstv %s1309
        %v1311 = vmul.f32 %v1306, %v1310
        %v1312 = vmul.f32 %v1307, %v1310
        %v1313 = vadd.f32 %v1311, 0.0
        %v1314 = vadd.f32 %v1312, 0.0
        %s1315 = sld [smem:[#allocation3 + $0x301]]
        %v1316 = vstv %s1315
        %v1317 = vmul.f32 %v1306, %v1316
        %v1318 = vmul.f32 %v1307, %v1316
        %1321 = vrot.lane.b32.xlu0 %v1317, 127
        %v1322 = vpop.permute.xlu0 %1321
        %1323 = vrot.lane.b32.xlu0 %v1318, 127
        %v1324 = vpop.permute.xlu0 %1323
        %v1327 = vadd.f32 %v1313, %v1322
        %v1328 = vadd.f32 %v1314, %v1324
        %s1329 = sld [smem:[#allocation3 + $0x302]]
        %v1330 = vstv %s1329
        %v1331 = vmul.f32 %v1306, %v1330
        %v1332 = vmul.f32 %v1307, %v1330
        %1335 = vrot.lane.b32.xlu0 %v1331, 126
        %v1336 = vpop.permute.xlu0 %1335
        %1337 = vrot.lane.b32.xlu0 %v1332, 126
        %v1338 = vpop.permute.xlu0 %1337
        %v1341 = vadd.f32 %v1327, %v1336
        %v1342 = vadd.f32 %v1328, %v1338
        %s1343 = sld [smem:[#allocation3 + $0x303]]
        %v1344 = vstv %s1343
        %v1345 = vmul.f32 %v1306, %v1344
        %v1346 = vmul.f32 %v1307, %v1344
        %v1347 = vmul.f32 %v1308, %v1344
        %v1351 = vrot.slane %v1345, 1
        %v1352 = vrot.slane %v1346, 1
        %v1353 = vsel %vm306, %v1351, %v1352
        %v1354 = vrot.slane %v1347, 1
        %v1355 = vsel %vm306, %v1352, %v1354
        %v1358 = vadd.f32 %v1341, %v1353
        %v1359 = vadd.f32 %v1342, %v1355
        %s1360 = sld [smem:[#allocation3 + $0x304]]
        %v1361 = vstv %s1360
        %v1362 = vmul.f32 %v1306, %v1361
        %v1363 = vmul.f32 %v1307, %v1361
        %v1364 = vmul.f32 %v1308, %v1361
        %v1368 = vrot.slane %v1362, 1
        %v1369 = vrot.slane %v1363, 1
        %v1370 = vsel %vm306, %v1368, %v1369
        %v1371 = vrot.slane %v1364, 1
        %v1372 = vsel %vm306, %v1369, %v1371
        %1373 = vrot.lane.b32.xlu0 %v1370, 127
        %v1374 = vpop.permute.xlu0 %1373
        %1375 = vrot.lane.b32.xlu0 %v1372, 127
        %v1376 = vpop.permute.xlu0 %1375
        %v1379 = vadd.f32 %v1358, %v1374
        %v1380 = vadd.f32 %v1359, %v1376
        %s1381 = sld [smem:[#allocation3 + $0x305]]
        %v1382 = vstv %s1381
        %v1383 = vmul.f32 %v1306, %v1382
        %v1384 = vmul.f32 %v1307, %v1382
        %v1385 = vmul.f32 %v1308, %v1382
        %v1389 = vrot.slane %v1383, 1
        %v1390 = vrot.slane %v1384, 1
        %v1391 = vsel %vm306, %v1389, %v1390
        %v1392 = vrot.slane %v1385, 1
        %v1393 = vsel %vm306, %v1390, %v1392
        %1394 = vrot.lane.b32.xlu0 %v1391, 126
        %v1395 = vpop.permute.xlu0 %1394
        %1396 = vrot.lane.b32.xlu0 %v1393, 126
        %v1397 = vpop.permute.xlu0 %1396
        %v1400 = vadd.f32 %v1379, %v1395
        %v1401 = vadd.f32 %v1380, %v1397
        %s1402 = sld [smem:[#allocation3 + $0x306]]
        %v1403 = vstv %s1402
        %v1404 = vmul.f32 %v1306, %v1403
        %v1405 = vmul.f32 %v1307, %v1403
        %v1406 = vmul.f32 %v1308, %v1403
        %v1410 = vrot.slane %v1404, 2
        %v1411 = vrot.slane %v1405, 2
        %v1412 = vsel %vm366, %v1410, %v1411
        %v1413 = vrot.slane %v1406, 2
        %v1414 = vsel %vm366, %v1411, %v1413
        %v1417 = vadd.f32 %v1400, %v1412
        %v1418 = vadd.f32 %v1401, %v1414
        %s1419 = sld [smem:[#allocation3 + $0x307]]
        %v1420 = vstv %s1419
        %v1421 = vmul.f32 %v1306, %v1420
        %v1422 = vmul.f32 %v1307, %v1420
        %v1423 = vmul.f32 %v1308, %v1420
        %v1427 = vrot.slane %v1421, 2
        %v1428 = vrot.slane %v1422, 2
        %v1429 = vsel %vm366, %v1427, %v1428
        %v1430 = vrot.slane %v1423, 2
        %v1431 = vsel %vm366, %v1428, %v1430
        %1432 = vrot.lane.b32.xlu0 %v1429, 127
        %v1433 = vpop.permute.xlu0 %1432
        %1434 = vrot.lane.b32.xlu0 %v1431, 127
        %v1435 = vpop.permute.xlu0 %1434
        %v1438 = vadd.f32 %v1417, %v1433
        %v1439 = vadd.f32 %v1418, %v1435
        %s1440 = sld [smem:[#allocation3 + $0x308]]
        %v1441 = vstv %s1440
        %v1442 = vmul.f32 %v1306, %v1441
        %v1443 = vmul.f32 %v1307, %v1441
        %v1444 = vmul.f32 %v1308, %v1441
        %v1448 = vrot.slane %v1442, 2
        %v1449 = vrot.slane %v1443, 2
        %v1450 = vsel %vm366, %v1448, %v1449
        %v1451 = vrot.slane %v1444, 2
        %v1452 = vsel %vm366, %v1449, %v1451
        %1453 = vrot.lane.b32.xlu0 %v1450, 126
        %v1454 = vpop.permute.xlu0 %1453
        %1455 = vrot.lane.b32.xlu0 %v1452, 126
        %v1456 = vpop.permute.xlu0 %1455
        %v1459 = vadd.f32 %v1438, %v1454
        %v1460 = vadd.f32 %v1439, %v1456
        %s1461 = sld [smem:[#allocation3 + $0x309]]
        %v1462 = vstv %s1461
        %v1463 = vadd.f32 %v1459, %v1462
        %v1464 = vadd.f32 %v1460, %v1462
        %v1465 = vmax.f32 %v1463, 0.0
        %v1466 = vmax.f32 %v1464, 0.0
        %s1467 = scalar_lea.vmem %s214, 48 [#allocation8]
        %v1468 = vld [vmem:[%s1467] sm:$0xff]
        %v1469 = vld [vmem:[%s1467 + $0x8] sm:$0xff]
        %1472 = vrot.lane.b32.xlu0 %v1468, 1
        %v1473 = vpop.permute.xlu0 %1472
        %1474 = vrot.lane.b32.xlu0 %v1469, 1
        %v1475 = vpop.permute.xlu0 %1474
        %1478 = vst.msk [vmem:[#allocation2 + $0x1] sm:$0xff] %vm258, %v1473
        %1479 = vst.msk [vmem:[#allocation2 + $0x9] sm:$0xff] %vm258, %v1475
        %v1480 = vld [vmem:[#allocation2] sm:$0xff]
        %v1481 = vld [vmem:[#allocation2 + $0x8] sm:$0xff]
        %v1482 = vld [vmem:[#allocation2 + $0x10] sm:$0x3]
        %s1483 = sld [smem:[#allocation3 + $0x380]]
        %v1484 = vstv %s1483
        %v1485 = vmul.f32 %v1480, %v1484
        %v1486 = vmul.f32 %v1481, %v1484
        %v1487 = vadd.f32 %v1485, 0.0
        %v1488 = vadd.f32 %v1486, 0.0
        %s1489 = sld [smem:[#allocation3 + $0x381]]
        %v1490 = vstv %s1489
        %v1491 = vmul.f32 %v1480, %v1490
        %v1492 = vmul.f32 %v1481, %v1490
        %1495 = vrot.lane.b32.xlu0 %v1491, 127
        %v1496 = vpop.permute.xlu0 %1495
        %1497 = vrot.lane.b32.xlu0 %v1492, 127
        %v1498 = vpop.permute.xlu0 %1497
        %v1501 = vadd.f32 %v1487, %v1496
        %v1502 = vadd.f32 %v1488, %v1498
        %s1503 = sld [smem:[#allocation3 + $0x382]]
        %v1504 = vstv %s1503
        %v1505 = vmul.f32 %v1480, %v1504
        %v1506 = vmul.f32 %v1481, %v1504
        %1509 = vrot.lane.b32.xlu0 %v1505, 126
        %v1510 = vpop.permute.xlu0 %1509
        %1511 = vrot.lane.b32.xlu0 %v1506, 126
        %v1512 = vpop.permute.xlu0 %1511
        %v1515 = vadd.f32 %v1501, %v1510
        %v1516 = vadd.f32 %v1502, %v1512
        %s1517 = sld [smem:[#allocation3 + $0x383]]
        %v1518 = vstv %s1517
        %v1519 = vmul.f32 %v1480, %v1518
        %v1520 = vmul.f32 %v1481, %v1518
        %v1521 = vmul.f32 %v1482, %v1518
        %v1525 = vrot.slane %v1519, 1
        %v1526 = vrot.slane %v1520, 1
        %v1527 = vsel %vm306, %v1525, %v1526
        %v1528 = vrot.slane %v1521, 1
        %v1529 = vsel %vm306, %v1526, %v1528
        %v1532 = vadd.f32 %v1515, %v1527
        %v1533 = vadd.f32 %v1516, %v1529
        %s1534 = sld [smem:[#allocation3 + $0x384]]
        %v1535 = vstv %s1534
        %v1536 = vmul.f32 %v1480, %v1535
        %v1537 = vmul.f32 %v1481, %v1535
        %v1538 = vmul.f32 %v1482, %v1535
        %v1542 = vrot.slane %v1536, 1
        %v1543 = vrot.slane %v1537, 1
        %v1544 = vsel %vm306, %v1542, %v1543
        %v1545 = vrot.slane %v1538, 1
        %v1546 = vsel %vm306, %v1543, %v1545
        %1547 = vrot.lane.b32.xlu0 %v1544, 127
        %v1548 = vpop.permute.xlu0 %1547
        %1549 = vrot.lane.b32.xlu0 %v1546, 127
        %v1550 = vpop.permute.xlu0 %1549
        %v1553 = vadd.f32 %v1532, %v1548
        %v1554 = vadd.f32 %v1533, %v1550
        %s1555 = sld [smem:[#allocation3 + $0x385]]
        %v1556 = vstv %s1555
        %v1557 = vmul.f32 %v1480, %v1556
        %v1558 = vmul.f32 %v1481, %v1556
        %v1559 = vmul.f32 %v1482, %v1556
        %v1563 = vrot.slane %v1557, 1
        %v1564 = vrot.slane %v1558, 1
        %v1565 = vsel %vm306, %v1563, %v1564
        %v1566 = vrot.slane %v1559, 1
        %v1567 = vsel %vm306, %v1564, %v1566
        %1568 = vrot.lane.b32.xlu0 %v1565, 126
        %v1569 = vpop.permute.xlu0 %1568
        %1570 = vrot.lane.b32.xlu0 %v1567, 126
        %v1571 = vpop.permute.xlu0 %1570
        %v1574 = vadd.f32 %v1553, %v1569
        %v1575 = vadd.f32 %v1554, %v1571
        %s1576 = sld [smem:[#allocation3 + $0x386]]
        %v1577 = vstv %s1576
        %v1578 = vmul.f32 %v1480, %v1577
        %v1579 = vmul.f32 %v1481, %v1577
        %v1580 = vmul.f32 %v1482, %v1577
        %v1584 = vrot.slane %v1578, 2
        %v1585 = vrot.slane %v1579, 2
        %v1586 = vsel %vm366, %v1584, %v1585
        %v1587 = vrot.slane %v1580, 2
        %v1588 = vsel %vm366, %v1585, %v1587
        %v1591 = vadd.f32 %v1574, %v1586
        %v1592 = vadd.f32 %v1575, %v1588
        %s1593 = sld [smem:[#allocation3 + $0x387]]
        %v1594 = vstv %s1593
        %v1595 = vmul.f32 %v1480, %v1594
        %v1596 = vmul.f32 %v1481, %v1594
        %v1597 = vmul.f32 %v1482, %v1594
        %v1601 = vrot.slane %v1595, 2
        %v1602 = vrot.slane %v1596, 2
        %v1603 = vsel %vm366, %v1601, %v1602
        %v1604 = vrot.slane %v1597, 2
        %v1605 = vsel %vm366, %v1602, %v1604
        %1606 = vrot.lane.b32.xlu0 %v1603, 127
        %v1607 = vpop.permute.xlu0 %1606
        %1608 = vrot.lane.b32.xlu0 %v1605, 127
        %v1609 = vpop.permute.xlu0 %1608
        %v1612 = vadd.f32 %v1591, %v1607
        %v1613 = vadd.f32 %v1592, %v1609
        %s1614 = sld [smem:[#allocation3 + $0x388]]
        %v1615 = vstv %s1614
        %v1616 = vmul.f32 %v1480, %v1615
        %v1617 = vmul.f32 %v1481, %v1615
        %v1618 = vmul.f32 %v1482, %v1615
        %v1622 = vrot.slane %v1616, 2
        %v1623 = vrot.slane %v1617, 2
        %v1624 = vsel %vm366, %v1622, %v1623
        %v1625 = vrot.slane %v1618, 2
        %v1626 = vsel %vm366, %v1623, %v1625
        %1627 = vrot.lane.b32.xlu0 %v1624, 126
        %v1628 = vpop.permute.xlu0 %1627
        %1629 = vrot.lane.b32.xlu0 %v1626, 126
        %v1630 = vpop.permute.xlu0 %1629
        %v1633 = vadd.f32 %v1612, %v1628
        %v1634 = vadd.f32 %v1613, %v1630
        %s1635 = sld [smem:[#allocation3 + $0x389]]
        %v1636 = vstv %s1635
        %v1637 = vadd.f32 %v1633, %v1636
        %v1638 = vadd.f32 %v1634, %v1636
        %v1639 = vmax.f32 %v1637, 0.0
        %v1640 = vmax.f32 %v1638, 0.0
        %s1641 = sld [smem:[#allocation3 + $0x400]]
        %v1642 = vstv %s1641
        %v1643 = vmul.f32 %v422, %v1642
        %v1644 = vmul.f32 %v423, %v1642
        %s1645 = sld [smem:[#allocation3 + $0x401]]
        %v1646 = vstv %s1645
        %v1647 = vmul.f32 %v596, %v1646
        %v1648 = vmul.f32 %v597, %v1646
        %v1649 = vadd.f32 %v1643, %v1647
        %v1650 = vadd.f32 %v1644, %v1648
        %s1651 = sld [smem:[#allocation3 + $0x402]]
        %v1652 = vstv %s1651
        %v1653 = vmul.f32 %v770, %v1652
        %v1654 = vmul.f32 %v771, %v1652
        %v1655 = vadd.f32 %v1649, %v1653
        %v1656 = vadd.f32 %v1650, %v1654
        %s1657 = sld [smem:[#allocation3 + $0x403]]
        %v1658 = vstv %s1657
        %v1659 = vmul.f32 %v944, %v1658
        %v1660 = vmul.f32 %v945, %v1658
        %v1661 = vadd.f32 %v1655, %v1659
        %v1662 = vadd.f32 %v1656, %v1660
        %s1663 = sld [smem:[#allocation3 + $0x404]]
        %v1664 = vstv %s1663
        %v1665 = vmul.f32 %v1117, %v1664
        %v1666 = vmul.f32 %v1118, %v1664
        %v1667 = vadd.f32 %v1661, %v1665
        %v1668 = vadd.f32 %v1662, %v1666
        %s1669 = sld [smem:[#allocation3 + $0x405]]
        %v1670 = vstv %s1669
        %v1671 = vmul.f32 %v1291, %v1670
        %v1672 = vmul.f32 %v1292, %v1670
        %v1673 = vadd.f32 %v1667, %v1671
        %v1674 = vadd.f32 %v1668, %v1672
        %s1675 = sld [smem:[#allocation3 + $0x406]]
        %v1676 = vstv %s1675
        %v1677 = vmul.f32 %v1465, %v1676
        %v1678 = vmul.f32 %v1466, %v1676
        %v1679 = vadd.f32 %v1673, %v1677
        %v1680 = vadd.f32 %v1674, %v1678
        %s1681 = sld [smem:[#allocation3 + $0x407]]
        %v1682 = vstv %s1681
        %v1683 = vmul.f32 %v1639, %v1682
        %v1684 = vmul.f32 %v1640, %v1682
        %v1685 = vadd.f32 %v1679, %v1683
        %v1686 = vadd.f32 %v1680, %v1684
        %s1687 = sld [smem:[#allocation3 + $0x408]]
        %v1688 = vstv %s1687
        %v1689 = vadd.f32 %v1685, %v1688
        %v1690 = vadd.f32 %v1686, %v1688
        %v1691 = vmax.f32 %v1689, 0.0
        %v1692 = vmax.f32 %v1690, 0.0
        %s1693 = sld [smem:[#allocation3 + $0x480]]
        %v1694 = vstv %s1693
        %v1695 = vmul.f32 %v422, %v1694
        %v1696 = vmul.f32 %v423, %v1694
        %s1697 = sld [smem:[#allocation3 + $0x481]]
        %v1698 = vstv %s1697
        %v1699 = vmul.f32 %v596, %v1698
        %v1700 = vmul.f32 %v597, %v1698
        %v1701 = vadd.f32 %v1695, %v1699
        %v1702 = vadd.f32 %v1696, %v1700
        %s1703 = sld [smem:[#allocation3 + $0x482]]
        %v1704 = vstv %s1703
        %v1705 = vmul.f32 %v770, %v1704
        %v1706 = vmul.f32 %v771, %v1704
        %v1707 = vadd.f32 %v1701, %v1705
        %v1708 = vadd.f32 %v1702, %v1706
        %s1709 = sld [smem:[#allocation3 + $0x483]]
        %v1710 = vstv %s1709
        %v1711 = vmul.f32 %v944, %v1710
        %v1712 = vmul.f32 %v945, %v1710
        %v1713 = vadd.f32 %v1707, %v1711
        %v1714 = vadd.f32 %v1708, %v1712
        %s1715 = sld [smem:[#allocation3 + $0x484]]
        %v1716 = vstv %s1715
        %v1717 = vmul.f32 %v1117, %v1716
        %v1718 = vmul.f32 %v1118, %v1716
        %v1719 = vadd.f32 %v1713, %v1717
        %v1720 = vadd.f32 %v1714, %v1718
        %s1721 = sld [smem:[#allocation3 + $0x485]]
        %v1722 = vstv %s1721
        %v1723 = vmul.f32 %v1291, %v1722
        %v1724 = vmul.f32 %v1292, %v1722
        %v1725 = vadd.f32 %v1719, %v1723
        %v1726 = vadd.f32 %v1720, %v1724
        %s1727 = sld [smem:[#allocation3 + $0x486]]
        %v1728 = vstv %s1727
        %v1729 = vmul.f32 %v1465, %v1728
        %v1730 = vmul.f32 %v1466, %v1728
        %v1731 = vadd.f32 %v1725, %v1729
        %v1732 = vadd.f32 %v1726, %v1730
        %s1733 = sld [smem:[#allocation3 + $0x487]]
        %v1734 = vstv %s1733
        %v1735 = vmul.f32 %v1639, %v1734
        %v1736 = vmul.f32 %v1640, %v1734
        %v1737 = vadd.f32 %v1731, %v1735
        %v1738 = vadd.f32 %v1732, %v1736
        %s1739 = sld [smem:[#allocation3 + $0x488]]
        %v1740 = vstv %s1739
        %v1741 = vadd.f32 %v1737, %v1740
        %v1742 = vadd.f32 %v1738, %v1740
        %v1743 = vmax.f32 %v1741, 0.0
        %v1744 = vmax.f32 %v1742, 0.0
        %s1745 = sld [smem:[#allocation3 + $0x500]]
        %v1746 = vstv %s1745
        %v1747 = vmul.f32 %v422, %v1746
        %v1748 = vmul.f32 %v423, %v1746
        %s1749 = sld [smem:[#allocation3 + $0x501]]
        %v1750 = vstv %s1749
        %v1751 = vmul.f32 %v596, %v1750
        %v1752 = vmul.f32 %v597, %v1750
        %v1753 = vadd.f32 %v1747, %v1751
        %v1754 = vadd.f32 %v1748, %v1752
        %s1755 = sld [smem:[#allocation3 + $0x502]]
        %v1756 = vstv %s1755
        %v1757 = vmul.f32 %v770, %v1756
        %v1758 = vmul.f32 %v771, %v1756
        %v1759 = vadd.f32 %v1753, %v1757
        %v1760 = vadd.f32 %v1754, %v1758
        %s1761 = sld [smem:[#allocation3 + $0x503]]
        %v1762 = vstv %s1761
        %v1763 = vmul.f32 %v944, %v1762
        %v1764 = vmul.f32 %v945, %v1762
        %v1765 = vadd.f32 %v1759, %v1763
        %v1766 = vadd.f32 %v1760, %v1764
        %s1767 = sld [smem:[#allocation3 + $0x504]]
        %v1768 = vstv %s1767
        %v1769 = vmul.f32 %v1117, %v1768
        %v1770 = vmul.f32 %v1118, %v1768
        %v1771 = vadd.f32 %v1765, %v1769
        %v1772 = vadd.f32 %v1766, %v1770
        %s1773 = sld [smem:[#allocation3 + $0x505]]
        %v1774 = vstv %s1773
        %v1775 = vmul.f32 %v1291, %v1774
        %v1776 = vmul.f32 %v1292, %v1774
        %v1777 = vadd.f32 %v1771, %v1775
        %v1778 = vadd.f32 %v1772, %v1776
        %s1779 = sld [smem:[#allocation3 + $0x506]]
        %v1780 = vstv %s1779
        %v1781 = vmul.f32 %v1465, %v1780
        %v1782 = vmul.f32 %v1466, %v1780
        %v1783 = vadd.f32 %v1777, %v1781
        %v1784 = vadd.f32 %v1778, %v1782
        %s1785 = sld [smem:[#allocation3 + $0x507]]
        %v1786 = vstv %s1785
        %v1787 = vmul.f32 %v1639, %v1786
        %v1788 = vmul.f32 %v1640, %v1786
        %v1789 = vadd.f32 %v1783, %v1787
        %v1790 = vadd.f32 %v1784, %v1788
        %s1791 = sld [smem:[#allocation3 + $0x508]]
        %v1792 = vstv %s1791
        %v1793 = vadd.f32 %v1789, %v1792
        %v1794 = vadd.f32 %v1790, %v1792
        %v1795 = vmax.f32 %v1793, 0.0
        %v1796 = vmax.f32 %v1794, 0.0
        %s1797 = sld [smem:[#allocation3 + $0x580]]
        %v1798 = vstv %s1797
        %v1799 = vmul.f32 %v422, %v1798
        %v1800 = vmul.f32 %v423, %v1798
        %s1801 = sld [smem:[#allocation3 + $0x581]]
        %v1802 = vstv %s1801
        %v1803 = vmul.f32 %v596, %v1802
        %v1804 = vmul.f32 %v597, %v1802
        %v1805 = vadd.f32 %v1799, %v1803
        %v1806 = vadd.f32 %v1800, %v1804
        %s1807 = sld [smem:[#allocation3 + $0x582]]
        %v1808 = vstv %s1807
        %v1809 = vmul.f32 %v770, %v1808
        %v1810 = vmul.f32 %v771, %v1808
        %v1811 = vadd.f32 %v1805, %v1809
        %v1812 = vadd.f32 %v1806, %v1810
        %s1813 = sld [smem:[#allocation3 + $0x583]]
        %v1814 = vstv %s1813
        %v1815 = vmul.f32 %v944, %v1814
        %v1816 = vmul.f32 %v945, %v1814
        %v1817 = vadd.f32 %v1811, %v1815
        %v1818 = vadd.f32 %v1812, %v1816
        %s1819 = sld [smem:[#allocation3 + $0x584]]
        %v1820 = vstv %s1819
        %v1821 = vmul.f32 %v1117, %v1820
        %v1822 = vmul.f32 %v1118, %v1820
        %v1823 = vadd.f32 %v1817, %v1821
        %v1824 = vadd.f32 %v1818, %v1822
        %s1825 = sld [smem:[#allocation3 + $0x585]]
        %v1826 = vstv %s1825
        %v1827 = vmul.f32 %v1291, %v1826
        %v1828 = vmul.f32 %v1292, %v1826
        %v1829 = vadd.f32 %v1823, %v1827
        %v1830 = vadd.f32 %v1824, %v1828
        %s1831 = sld [smem:[#allocation3 + $0x586]]
        %v1832 = vstv %s1831
        %v1833 = vmul.f32 %v1465, %v1832
        %v1834 = vmul.f32 %v1466, %v1832
        %v1835 = vadd.f32 %v1829, %v1833
        %v1836 = vadd.f32 %v1830, %v1834
        %s1837 = sld [smem:[#allocation3 + $0x587]]
        %v1838 = vstv %s1837
        %v1839 = vmul.f32 %v1639, %v1838
        %v1840 = vmul.f32 %v1640, %v1838
        %v1841 = vadd.f32 %v1835, %v1839
        %v1842 = vadd.f32 %v1836, %v1840
        %s1843 = sld [smem:[#allocation3 + $0x588]]
        %v1844 = vstv %s1843
        %v1845 = vadd.f32 %v1841, %v1844
        %v1846 = vadd.f32 %v1842, %v1844
        %v1847 = vmax.f32 %v1845, 0.0
        %v1848 = vmax.f32 %v1846, 0.0
        %s1849 = sld [smem:[#allocation3 + $0x600]]
        %v1850 = vstv %s1849
        %v1851 = vmul.f32 %v1691, %v1850
        %v1852 = vmul.f32 %v1692, %v1850
        %s1853 = sld [smem:[#allocation3 + $0x601]]
        %v1854 = vstv %s1853
        %v1855 = vmul.f32 %v1743, %v1854
        %v1856 = vmul.f32 %v1744, %v1854
        %v1857 = vadd.f32 %v1851, %v1855
        %v1858 = vadd.f32 %v1852, %v1856
        %s1859 = sld [smem:[#allocation3 + $0x602]]
        %v1860 = vstv %s1859
        %v1861 = vmul.f32 %v1795, %v1860
        %v1862 = vmul.f32 %v1796, %v1860
        %v1863 = vadd.f32 %v1857, %v1861
        %v1864 = vadd.f32 %v1858, %v1862
        %s1865 = sld [smem:[#allocation3 + $0x603]]
        %v1866 = vstv %s1865
        %v1867 = vmul.f32 %v1847, %v1866
        %v1868 = vmul.f32 %v1848, %v1866
        %v1869 = vadd.f32 %v1863, %v1867
        %v1870 = vadd.f32 %v1864, %v1868
        %s1871 = sld [smem:[#allocation3 + $0x604]]
        %v1872 = vstv %s1871
        %v1873 = vadd.f32 %v1869, %v1872
        %v1874 = vadd.f32 %v1870, %v1872
        %v1875 = vxor.u32 %v1873, 2147483648
        %v1876 = vxor.u32 %v1874, 2147483648
        %v1877 = vmul.f32 %v1875, 1.442695
        %v1878 = vpow.pop %v1877
        %v1879 = vmul.f32 %v1876, 1.442695
        %v1880 = vpow.pop %v1879
        %v1881 = vadd.f32 %v1878, 1.0
        %v1882 = vadd.f32 %v1880, 1.0
        %v1883 = vrcp.pop %v1881
        %v1884 = vmul.f32 1.0, %v1883
        %v1885 = vrcp.pop %v1882
        %v1886 = vmul.f32 1.0, %v1885
        %vm1887 = vcmask 130048
        %1888 = vst.msk [vmem:[%s242] sm:$0xff] %vm1887, %v1884
        %1889 = vst.msk [vmem:[%s242 + $0x8] sm:$0xff] %vm1887, %v1886
        %s1890 = sld [smem:[#allocation3 + $0x680]]
        %v1891 = vstv %s1890
        %v1892 = vmul.f32 %v1691, %v1891
        %v1893 = vmul.f32 %v1692, %v1891
        %s1894 = sld [smem:[#allocation3 + $0x681]]
        %v1895 = vstv %s1894
        %v1896 = vmul.f32 %v1743, %v1895
        %v1897 = vmul.f32 %v1744, %v1895
        %v1898 = vadd.f32 %v1892, %v1896
        %v1899 = vadd.f32 %v1893, %v1897
        %s1900 = sld [smem:[#allocation3 + $0x682]]
        %v1901 = vstv %s1900
        %v1902 = vmul.f32 %v1795, %v1901
        %v1903 = vmul.f32 %v1796, %v1901
        %v1904 = vadd.f32 %v1898, %v1902
        %v1905 = vadd.f32 %v1899, %v1903
        %s1906 = sld [smem:[#allocation3 + $0x683]]
        %v1907 = vstv %s1906
        %v1908 = vmul.f32 %v1847, %v1907
        %v1909 = vmul.f32 %v1848, %v1907
        %v1910 = vadd.f32 %v1904, %v1908
        %v1911 = vadd.f32 %v1905, %v1909
        %s1912 = sld [smem:[#allocation3 + $0x684]]
        %v1913 = vstv %s1912
        %v1914 = vadd.f32 %v1910, %v1913
        %v1915 = vadd.f32 %v1911, %v1913
        %v1916 = vxor.u32 %v1914, 2147483648
        %v1917 = vxor.u32 %v1915, 2147483648
        %v1918 = vmul.f32 %v1916, 1.442695
        %v1919 = vpow.pop %v1918
        %v1920 = vmul.f32 %v1917, 1.442695
        %v1921 = vpow.pop %v1920
        %v1922 = vadd.f32 %v1919, 1.0
        %v1923 = vadd.f32 %v1921, 1.0
        %v1924 = vrcp.pop %v1922
        %v1925 = vmul.f32 1.0, %v1924
        %v1926 = vrcp.pop %v1923
        %v1927 = vmul.f32 1.0, %v1926
        %s1928 = scalar_lea.vmem %s242, 16 [#allocation10]
        %1929 = vst.msk [vmem:[%s1928] sm:$0xff] %vm1887, %v1925
        %1930 = vst.msk [vmem:[%s1928 + $0x8] sm:$0xff] %vm1887, %v1927
        %s1931 = sld [smem:[#allocation3 + $0x700]]
        %v1932 = vstv %s1931
        %v1933 = vmul.f32 %v1691, %v1932
        %v1934 = vmul.f32 %v1692, %v1932
        %s1935 = sld [smem:[#allocation3 + $0x701]]
        %v1936 = vstv %s1935
        %v1937 = vmul.f32 %v1743, %v1936
        %v1938 = vmul.f32 %v1744, %v1936
        %v1939 = vadd.f32 %v1933, %v1937
        %v1940 = vadd.f32 %v1934, %v1938
        %s1941 = sld [smem:[#allocation3 + $0x702]]
        %v1942 = vstv %s1941
        %v1943 = vmul.f32 %v1795, %v1942
        %v1944 = vmul.f32 %v1796, %v1942
        %v1945 = vadd.f32 %v1939, %v1943
        %v1946 = vadd.f32 %v1940, %v1944
        %s1947 = sld [smem:[#allocation3 + $0x703]]
        %v1948 = vstv %s1947
        %v1949 = vmul.f32 %v1847, %v1948
        %v1950 = vmul.f32 %v1848, %v1948
        %v1951 = vadd.f32 %v1945, %v1949
        %v1952 = vadd.f32 %v1946, %v1950
        %s1953 = sld [smem:[#allocation3 + $0x704]]
        %v1954 = vstv %s1953
        %v1955 = vadd.f32 %v1951, %v1954
        %v1956 = vadd.f32 %v1952, %v1954
        %v1957 = vxor.u32 %v1955, 2147483648
        %v1958 = vxor.u32 %v1956, 2147483648
        %v1959 = vmul.f32 %v1957, 1.442695
        %v1960 = vpow.pop %v1959
        %v1961 = vmul.f32 %v1958, 1.442695
        %v1962 = vpow.pop %v1961
        %v1963 = vadd.f32 %v1960, 1.0
        %v1964 = vadd.f32 %v1962, 1.0
        %v1965 = vrcp.pop %v1963
        %v1966 = vmul.f32 1.0, %v1965
        %v1967 = vrcp.pop %v1964
        %v1968 = vmul.f32 1.0, %v1967
        %s1969 = scalar_lea.vmem %s242, 32 [#allocation10]
        %1970 = vst.msk [vmem:[%s1969] sm:$0xff] %vm1887, %v1966
        %1971 = vst.msk [vmem:[%s1969 + $0x8] sm:$0xff] %vm1887, %v1968
        %s1972 = sld [smem:[#allocation3 + $0x780]]
        %v1973 = vstv %s1972
        %v1974 = vmul.f32 %v1691, %v1973
        %v1975 = vmul.f32 %v1692, %v1973
        %s1976 = sld [smem:[#allocation3 + $0x781]]
        %v1977 = vstv %s1976
        %v1978 = vmul.f32 %v1743, %v1977
        %v1979 = vmul.f32 %v1744, %v1977
        %v1980 = vadd.f32 %v1974, %v1978
        %v1981 = vadd.f32 %v1975, %v1979
        %s1982 = sld [smem:[#allocation3 + $0x782]]
        %v1983 = vstv %s1982
        %v1984 = vmul.f32 %v1795, %v1983
        %v1985 = vmul.f32 %v1796, %v1983
        %v1986 = vadd.f32 %v1980, %v1984
        %v1987 = vadd.f32 %v1981, %v1985
        %s1988 = sld [smem:[#allocation3 + $0x783]]
        %v1989 = vstv %s1988
        %v1990 = vmul.f32 %v1847, %v1989
        %v1991 = vmul.f32 %v1848, %v1989
        %v1992 = vadd.f32 %v1986, %v1990
        %v1993 = vadd.f32 %v1987, %v1991
        %s1994 = sld [smem:[#allocation3 + $0x784]]
        %v1995 = vstv %s1994
        %v1996 = vadd.f32 %v1992, %v1995
        %v1997 = vadd.f32 %v1993, %v1995
        %v1998 = vxor.u32 %v1996, 2147483648
        %v1999 = vxor.u32 %v1997, 2147483648
        %v2000 = vmul.f32 %v1998, 1.442695
        %v2001 = vpow.pop %v2000
        %v2002 = vmul.f32 %v1999, 1.442695
        %v2003 = vpow.pop %v2002
        %v2004 = vadd.f32 %v2001, 1.0
        %v2005 = vadd.f32 %v2003, 1.0
        %v2006 = vrcp.pop %v2004
        %v2007 = vmul.f32 1.0, %v2006
        %v2008 = vrcp.pop %v2005
        %v2009 = vmul.f32 1.0, %v2008
        %s2010 = scalar_lea.vmem %s242, 48 [#allocation10]
        %2011 = vst.msk [vmem:[%s2010] sm:$0xff] %vm1887, %v2007
        %2012 = vst.msk [vmem:[%s2010 + $0x8] sm:$0xff] %vm1887, %v2009
        %s2013 = sand.u32 %s105, 1
        %s2014 = scalar_lea.sflag [#allocation5], %s2013
        %s2015 = sand.u32 %s105, 1
        %s2016 = smul.addr %s2015, 64
        %s2017 = scalar_lea.vmem [#allocation10], %s2016
        // Predicated region
        $region45: #{tpu_custom_call.1} parent=31 // pred_check
          %p2018 = pneg %p115
        $region46: #{tpu_custom_call.1} parent=31 // pred_check_branch
          %2020 = sbr.rel (%p2018) target = $region48
        $region47: #{tpu_custom_call.1} parent=31 // pred_region
          %s2022 = ssub.s32 1024, 1024
          %2023 = vsyncadd %s2014, %s2022
          %s2024 = smul.addr %s24, 8
          %s2025 = smul.addr %s2024, 128
          %s2026 = scalar_lea.hbm %s3, %s2025
          %s2027 = sshll.u32 %s2017, 4
          %s2028 = int_to_ptr.vmem [resolvable:$true] %s2027
          %2033 = dma.vmem_to_hbm [thread:$0]  %s2028, 1024, %s2026, %s2014, 128, 128, 8
        $region48: #{tpu_custom_call.1} parent=31 // pred_fallthru
          _
      $region32: #{tpu_custom_call.1} parent=5 // pred_fallthru
        _
      %p2034 = scmp.le.s32.totalorder 2, %s19
      // Predicated region
      $region49: #{tpu_custom_call.1} parent=5 // pred_check
        %p2035 = pneg %p2034
      $region50: #{tpu_custom_call.1} parent=5 // pred_check_branch
        %2037 = sbr.rel (%p2035) target = $region52
      $region51: #{tpu_custom_call.1} parent=5 // pred_region
        %s2038 = ssub.s32 %s19, 2
        // Predicated region
        $region53: #{tpu_custom_call.1} parent=51 // pred_check
          %p2039 = pneg %p121
        $region54: #{tpu_custom_call.1} parent=51 // pred_check_branch
          %2041 = sbr.rel (%p2039) target = $region56
        $region55: #{tpu_custom_call.1} parent=51 // pred_region
          %s2042 = sand.u32 %s106, 1
          %s2043 = scalar_lea.sflag [#allocation5], %s2042
          %s2044 = sand.u32 %s106, 1
          %s2045 = smul.addr %s2044, 64
          %s2046 = scalar_lea.vmem [#allocation10], %s2045
          %2047 = dma.done %s2043, 1024
        $region56: #{tpu_custom_call.1} parent=51 // pred_fallthru
          _
      $region52: #{tpu_custom_call.1} parent=5 // pred_fallthru
        _
    $region6: #{tpu_custom_call.1} parent=1 // loop_footer
      %s23 = sadd.s32 1, %s19
    $region7: #{tpu_custom_call.1} parent=1 // loop_footer_branch
      %18 = sbr.rel target = $region3
    $region8: #{tpu_custom_call.1} parent=1 // loop_exit
      _
    %2048 = vsyncpa [#allocation4], 1
    %s2049 = scalar_lea.sflag [#allocation4], 1
    %2050 = vsyncpa %s2049, 1
    %2051 = vsyncpa [#allocation9], 1
    %s2052 = scalar_lea.sflag [#allocation9], 1
    %2053 = vsyncpa %s2052, 1
    %2054 = vsyncpa [#allocation5], 1
    %s2055 = scalar_lea.sflag [#allocation5], 1
    %2056 = vsyncpa %s2055, 1
    %2057 = vsyncpa [#allocation6], 1
    %s2058 = scalar_lea.sflag [#allocation6], 1
    %2059 = vsyncpa %s2058, 1

</llo_original>
